<compile_context>
chip_gen: v6e
topology: v6e:2x2x1
jax: 0.10.0
libtpu: 0.0.40
codegen_flags: <defaults>
</compile_context>

<pallas_src>
import functools

import jax
import jax.numpy as jnp
from jax import lax
from jax.experimental import pallas as pl
from jax.experimental.pallas import tpu as pltpu

EPS = 1e-5
NEG_SLOPE = 0.01  # nn.LeakyReLU default negative_slope
LANE = 128


def _resblock_kernel(x_ref, w1b_ref, w2b_ref, sel_ref, selt_ref,
                     g1_ref, b1_ref, g2_ref, b2_ref, o_ref,
                     *, n_img, rows, width):
    # x_ref/o_ref: (N*H, lanes)   lane-dense, 128-padded activation slabs (f32)
    # w*b_ref:     (lanes, 3*lanes) stacked bf16 row bands [up | center | down]
    # sel_ref:     (lanes, C)     lane -> channel fold selector (zero on padded lanes)
    # selt_ref:    (C, lanes)     channel -> lane broadcast selector
    # g*/b*:       (1, C)         BN affine params
    nh, lanes = x_ref.shape
    inv_cnt = 1.0 / float(n_img * rows * width)

    # Cross-image boundary masks for the vertical taps (computed once, reused by both
    # convs): row r-1 / r+1 only contributes if it belongs to the same image.
    rid = lax.broadcasted_iota(jnp.int32, (nh, lanes), 0)
    has_up = (rid % rows) != 0
    has_dn = (rid % rows) != (rows - 1)

    def stack2(a, b):
        # Stack two (1, K) rows into a (2, K) slab via broadcast + select
        # (avoids an unaligned sublane concatenate).
        r2 = lax.broadcasted_iota(jnp.int32, (2,) + a.shape[1:], 0)
        return jnp.where(r2 == 0, jnp.broadcast_to(a, r2.shape),
                         jnp.broadcast_to(b, r2.shape))

    def conv3x3(src, wb_ref):
        # One lane-dense bf16 MXU matmul against the three stacked row bands (the
        # W-direction zero padding is encoded in the bands), f32 accumulation.  The
        # vertical taps are combined fully in vregs: XLU sublane rolls by +-1 row +
        # VPU select for the per-image H padding.  No scratch, no RMW slices.
        res = jnp.dot(src.astype(jnp.bfloat16), wb_ref[...],
                      preferred_element_type=jnp.float32)         # (NH, 3*lanes)
        up = res[:, :lanes]                # contribution of source row r-1
        ctr = res[:, lanes:2 * lanes]      # contribution of source row r
        dn = res[:, 2 * lanes:]            # contribution of source row r+1
        up_sh = jnp.where(has_up, pltpu.roll(up, shift=1, axis=0), 0.0)
        dn_sh = jnp.where(has_dn, pltpu.roll(dn, shift=nh - 1, axis=0), 0.0)
        return ctr + up_sh + dn_sh

    def bn_fold(y, g_ref, b_ref):
        # Training-mode BatchNorm2d folded to a per-channel FMA.  Stats come from the
        # f32 conv accumulator (not the bf16 operands); lane<->channel fold/broadcast
        # is two batched selector matmuls (sums stacked on the M axis).
        s1 = jnp.sum(y, axis=0, keepdims=True)           # (1, lanes) sum
        s2 = jnp.sum(y * y, axis=0, keepdims=True)       # (1, lanes) sum of squares
        s12c = jnp.dot(stack2(s1, s2), sel_ref[...],
                       preferred_element_type=jnp.float32)        # (2, C)
        mean = s12c[0:1, :] * inv_cnt
        var = s12c[1:2, :] * inv_cnt - mean * mean
        scale = g_ref[...] * lax.rsqrt(var + EPS)         # (1, C)
        shift = b_ref[...] - mean * scale                 # (1, C)
        ss_l = jnp.dot(stack2(scale, shift), selt_ref[...],
                       preferred_element_type=jnp.float32)        # (2, lanes)
        return y * ss_l[0:1, :] + ss_l[1:2, :]            # one FMA per element

    def lrelu(v):
        return jnp.maximum(v, NEG_SLOPE * v)              # mul+max, no compare/select

    a = lrelu(bn_fold(conv3x3(x_ref[...], w1b_ref), g1_ref, b1_ref))  # conv1->bn1->lrelu
    z = bn_fold(conv3x3(a, w2b_ref), g2_ref, b2_ref)                  # conv2->bn2
    o_ref[...] = lrelu(z + x_ref[...])   # residual re-read from VMEM (cheap vld slot)


def _row_banded_weights(w_hwio, width, lanes):
    """(3,3,Cin,Cout) HWIO -> (lanes, 3*lanes) stacked row-band matrices [up|ctr|dn].

    Band ky: B[ky][ix*Cin+ci, ox*Cout+co] = w[ky, ix-ox+1, ci, co] for |ix-ox| <= 1,
    else 0, so a slab row (one image row, W*Cin lanes) times B[ky] performs the kx-
    and ci-contractions of the 3x3 conv for vertical tap ky with the W zero-padding
    built into the band.  Bands are zero-padded to `lanes` on both axes (lane-dense,
    128-aligned result splits) and stacked along the output axis so each conv is one
    MXU matmul.  Tiny plain-JAX glue (weight reformatting, like OIHW->HWIO).
    """
    kh, kw, cin, cout = w_hwio.shape
    bands = []
    for ky in range(kh):
        m = jnp.zeros((width * cin, width * cout), jnp.float32)
        for kx in range(kw):
            shift_eye = jnp.eye(width, k=1 - kx, dtype=jnp.float32)  # ox = ix - (kx-1)
            m = m + jnp.kron(shift_eye, w_hwio[ky, kx].astype(jnp.float32))
        m = jnp.pad(m, ((0, lanes - width * cin), (0, lanes - width * cout)))
        bands.append(m)
    return jnp.concatenate(bands, axis=1).astype(jnp.bfloat16)   # (lanes, 3*lanes)


def improved_residual_block(x_nhwc, w1_hwio, w2_hwio, g1, b1, g2, b2):
    N, H, W, C = x_nhwc.shape
    assert w1_hwio.shape[2] == w1_hwio.shape[3] == C, "residual add needs in_ch == out_ch"
    WC = W * C
    lanes = max(LANE, ((WC + LANE - 1) // LANE) * LANE)   # lane-dense, 128-aligned

    # Lane-dense presentation: collapse (W, C) onto the lane axis (contiguous reshape),
    # zero-padded to a multiple of 128 so stores are unmasked full-width vst.
    x2 = x_nhwc.reshape(N * H, WC).astype(jnp.float32)
    x2 = jnp.pad(x2, ((0, 0), (0, lanes - WC)))

    w1b = _row_banded_weights(w1_hwio, W, lanes)          # bf16 (lanes, 3*lanes)
    w2b = _row_banded_weights(w2_hwio, W, lanes)
    sel = jnp.pad(jnp.tile(jnp.eye(C, dtype=jnp.float32), (W, 1)),
                  ((0, lanes - WC), (0, 0)))              # (lanes, C)
    selt = jnp.transpose(sel)                             # (C, lanes)
    g1 = g1.reshape(1, C).astype(jnp.float32)
    b1 = b1.reshape(1, C).astype(jnp.float32)
    g2 = g2.reshape(1, C).astype(jnp.float32)
    b2 = b2.reshape(1, C).astype(jnp.float32)

    operands = (x2, w1b, w2b, sel, selt, g1, b1, g2, b2)
    total_bytes = sum(int(a.size) * a.dtype.itemsize for a in operands) + x2.size * 4
    # Explicit scoped-VMEM budget with headroom; well under v7x's 64 MiB at these shapes.
    vmem_limit = int(min(96 * 2 ** 20, max(16 * 2 ** 20, 4 * total_bytes)))

    vmem = pl.BlockSpec(memory_space=pltpu.MemorySpace.VMEM)
    kernel = functools.partial(_resblock_kernel, n_img=N, rows=H, width=W)
    out2 = pl.pallas_call(
        kernel,
        out_shape=jax.ShapeDtypeStruct((N * H, lanes), jnp.float32),
        in_specs=[vmem] * 9,
        out_specs=vmem,
        # x2 is freshly built above and consumed only by this call -> safe to reuse.
        input_output_aliases={0: 0},
        compiler_params=pltpu.CompilerParams(vmem_limit_bytes=vmem_limit),
    )(*operands)
    return out2[:, :WC].reshape(N, H, W, C)


def reference(x_nhwc, w1, w2, g1, b1, g2, b2):
    # pure-JAX reference for correctness checking
    def conv(x, w):
        return lax.conv_general_dilated(
            x, w, (1, 1), 'SAME', dimension_numbers=('NHWC', 'HWIO', 'NHWC'))

    def bn(y, g, b):
        mean = jnp.mean(y, axis=(0, 1, 2), keepdims=True)
        var = jnp.mean((y - mean) ** 2, axis=(0, 1, 2), keepdims=True)
        return (y - mean) / jnp.sqrt(var + EPS) * g.reshape(1, 1, 1, -1) + b.reshape(1, 1, 1, -1)

    def lrelu(y):
        return jnp.where(y > 0, y, NEG_SLOPE * y)

    y = lrelu(bn(conv(x_nhwc, w1), g1, b1))
    z = bn(conv(y, w2), g2, b2)
    return lrelu(z + x_nhwc)


if __name__ == "__main__":
    key = jax.random.PRNGKey(0)
    k1, k2, k3, k4, k5 = jax.random.split(key, 5)
    N, C, H, W = 2, 4, 16, 16

    # PyTorch-layout input (NCHW), deterministic
    x_nchw = jax.random.normal(k1, (N, C, H, W), jnp.float32)
    x = jnp.transpose(x_nchw, (0, 2, 3, 1))  # -> NHWC

    # PyTorch conv weights are (out, in, kh, kw); transpose to HWIO
    w1_oihw = 0.2 * jax.random.normal(k2, (C, C, 3, 3), jnp.float32)
    w2_oihw = 0.2 * jax.random.normal(k3, (C, C, 3, 3), jnp.float32)
    w1 = jnp.transpose(w1_oihw, (2, 3, 1, 0))
    w2 = jnp.transpose(w2_oihw, (2, 3, 1, 0))

    # BN affine params (deterministic, slightly perturbed from defaults)
    g1 = (1.0 + 0.1 * jax.random.normal(k4, (C,), jnp.float32)).reshape(1, C)
    b1 = (0.1 * jax.random.normal(k5, (C,), jnp.float32)).reshape(1, C)
    g2 = jnp.ones((1, C), jnp.float32)
    b2 = jnp.zeros((1, C), jnp.float32)

    out = improved_residual_block(x, w1, w2, g1, b1, g2, b2)
    out = jax.block_until_ready(out)

    ref = reference(x, w1, w2, g1.reshape(-1), b1.reshape(-1),
                    g2.reshape(-1), b2.reshape(-1))
    # Tolerance reflects bf16 MXU operands for the two convs (f32 accumulation,
    # f32 BatchNorm statistics); the f32 reference is exact.
    max_err = float(jnp.max(jnp.abs(out - ref)))
    assert jnp.allclose(out, ref, atol=3e-2, rtol=3e-2), f"max_err={max_err}"
    print("KERNEL_OK")
</pallas_src>

<mosaic_0001>
module attributes {stable_mosaic.version = 11 : i64} {
  func.func @_resblock_kernel(%arg0: memref<32x128xf32, #tpu.memory_space<vmem>>, %arg1: memref<128x384xbf16, #tpu.memory_space<vmem>>, %arg2: memref<128x384xbf16, #tpu.memory_space<vmem>>, %arg3: memref<128x4xf32, #tpu.memory_space<vmem>>, %arg4: memref<4x128xf32, #tpu.memory_space<vmem>>, %arg5: memref<1x4xf32, #tpu.memory_space<vmem>>, %arg6: memref<1x4xf32, #tpu.memory_space<vmem>>, %arg7: memref<1x4xf32, #tpu.memory_space<vmem>>, %arg8: memref<1x4xf32, #tpu.memory_space<vmem>>, %arg9: memref<32x128xf32, #tpu.memory_space<vmem>>) attributes {dimension_semantics = [], scalar_prefetch = 0 : i64, scratch_operands = 0 : i64, tpu.core_type = #tpu.core_type<tc>} {
    %0 = tpu.iota {dimensions = array<i32: 0>} : vector<32x128xi32>
    %c16_i32 = arith.constant 16 : i32
    %c0_i32 = arith.constant 0 : i32
    %1 = arith.cmpi eq, %c16_i32, %c0_i32 : i32
    %c1_i32 = arith.constant 1 : i32
    %2 = arith.select %1, %c1_i32, %c16_i32 : i32
    %3 = vector.broadcast %2 : i32 to vector<32x128xi32>
    %4 = arith.remsi %0, %3 : vector<32x128xi32>
    %c0_i32_0 = arith.constant 0 : i32
    %5 = vector.broadcast %c0_i32_0 : i32 to vector<32x128xi32>
    %6 = arith.cmpi ne, %4, %5 : vector<32x128xi32>
    %c0_i32_1 = arith.constant 0 : i32
    %7 = vector.broadcast %c0_i32_1 : i32 to vector<32x128xi32>
    %8 = arith.cmpi slt, %4, %7 : vector<32x128xi32>
    %c0_i32_2 = arith.constant 0 : i32
    %9 = arith.cmpi slt, %2, %c0_i32_2 : i32
    %10 = vector.broadcast %9 : i1 to vector<32x128xi1>
    %11 = vector.broadcast %10 : vector<32x128xi1> to vector<32x128xi1>
    %12 = arith.xori %8, %11 : vector<32x128xi1>
    %13 = arith.andi %12, %6 : vector<32x128xi1>
    %14 = vector.broadcast %2 : i32 to vector<32x128xi32>
    %15 = arith.addi %4, %14 : vector<32x128xi32>
    %16 = arith.select %13, %15, %4 : vector<32x128xi1>, vector<32x128xi32>
    %c0_i32_3 = arith.constant 0 : i32
    %17 = vector.broadcast %c0_i32_3 : i32 to vector<32x128xi32>
    %18 = arith.cmpi ne, %16, %17 : vector<32x128xi32>
    %c16_i32_4 = arith.constant 16 : i32
    %c0_i32_5 = arith.constant 0 : i32
    %19 = arith.cmpi eq, %c16_i32_4, %c0_i32_5 : i32
    %c1_i32_6 = arith.constant 1 : i32
    %20 = arith.select %19, %c1_i32_6, %c16_i32_4 : i32
    %21 = vector.broadcast %20 : i32 to vector<32x128xi32>
    %22 = arith.remsi %0, %21 : vector<32x128xi32>
    %c0_i32_7 = arith.constant 0 : i32
    %23 = vector.broadcast %c0_i32_7 : i32 to vector<32x128xi32>
    %24 = arith.cmpi ne, %22, %23 : vector<32x128xi32>
    %c0_i32_8 = arith.constant 0 : i32
    %25 = vector.broadcast %c0_i32_8 : i32 to vector<32x128xi32>
    %26 = arith.cmpi slt, %22, %25 : vector<32x128xi32>
    %c0_i32_9 = arith.constant 0 : i32
    %27 = arith.cmpi slt, %20, %c0_i32_9 : i32
    %28 = vector.broadcast %27 : i1 to vector<32x128xi1>
    %29 = vector.broadcast %28 : vector<32x128xi1> to vector<32x128xi1>
    %30 = arith.xori %26, %29 : vector<32x128xi1>
    %31 = arith.andi %30, %24 : vector<32x128xi1>
    %32 = vector.broadcast %20 : i32 to vector<32x128xi32>
    %33 = arith.addi %22, %32 : vector<32x128xi32>
    %34 = arith.select %31, %33, %22 : vector<32x128xi1>, vector<32x128xi32>
    %c15_i32 = arith.constant 15 : i32
    %35 = vector.broadcast %c15_i32 : i32 to vector<32x128xi32>
    %36 = arith.cmpi ne, %34, %35 : vector<32x128xi32>
    %c0 = arith.constant 0 : index
    %c0_10 = arith.constant 0 : index
    %37 = vector.load %arg0[%c0, %c0_10] : memref<32x128xf32, #tpu.memory_space<vmem>>, vector<32x128xf32>
    %38 = arith.truncf %37 : vector<32x128xf32> to vector<32x128xbf16>
    %c0_11 = arith.constant 0 : index
    %c0_12 = arith.constant 0 : index
    %39 = vector.load %arg1[%c0_11, %c0_12] : memref<128x384xbf16, #tpu.memory_space<vmem>>, vector<128x384xbf16>
    %cst = arith.constant dense<0.000000e+00> : vector<32x384xf32>
    %40 = tpu.matmul %38, %39, %cst {dimension_numbers = #tpu.dot_dimension_numbers<[1], [0], [0], [1], [0, 0, 1, 1], [], []>} : vector<32x128xbf16>, vector<128x384xbf16>, vector<32x384xf32> -> vector<32x384xf32>
    %41 = vector.extract_strided_slice %40 {offsets = [0, 0], sizes = [32, 128], strides = [1, 1]} : vector<32x384xf32> to vector<32x128xf32>
    %42 = vector.extract_strided_slice %40 {offsets = [0, 128], sizes = [32, 128], strides = [1, 1]} : vector<32x384xf32> to vector<32x128xf32>
    %43 = vector.extract_strided_slice %40 {offsets = [0, 256], sizes = [32, 128], strides = [1, 1]} : vector<32x384xf32> to vector<32x128xf32>
    %c1_i32_13 = arith.constant 1 : i32
    %44 = tpu.dynamic_rotate %41 by %c1_i32_13 dim 0 : vector<32x128xf32>, i32 -> vector<32x128xf32>
    %cst_14 = arith.constant 0.000000e+00 : f32
    %45 = vector.broadcast %cst_14 : f32 to vector<32x128xf32>
    %46 = arith.select %18, %44, %45 : vector<32x128xi1>, vector<32x128xf32>
    %c31_i32 = arith.constant 31 : i32
    %47 = tpu.dynamic_rotate %43 by %c31_i32 dim 0 : vector<32x128xf32>, i32 -> vector<32x128xf32>
    %cst_15 = arith.constant 0.000000e+00 : f32
    %48 = vector.broadcast %cst_15 : f32 to vector<32x128xf32>
    %49 = arith.select %36, %47, %48 : vector<32x128xi1>, vector<32x128xf32>
    %50 = arith.addf %42, %46 : vector<32x128xf32>
    %51 = arith.addf %50, %49 : vector<32x128xf32>
    %cst_16 = arith.constant dense<0.000000e+00> : vector<128xf32>
    %52 = vector.multi_reduction <add>, %51, %cst_16 [0] : vector<32x128xf32> to vector<128xf32>
    %53 = vector.shape_cast %52 : vector<128xf32> to vector<1x128xf32>
    %54 = arith.mulf %51, %51 : vector<32x128xf32>
    %cst_17 = arith.constant dense<0.000000e+00> : vector<128xf32>
    %55 = vector.multi_reduction <add>, %54, %cst_17 [0] : vector<32x128xf32> to vector<128xf32>
    %56 = vector.shape_cast %55 : vector<128xf32> to vector<1x128xf32>
    %57 = tpu.iota {dimensions = array<i32: 0>} : vector<2x128xi32>
    %c0_i32_18 = arith.constant 0 : i32
    %58 = vector.broadcast %c0_i32_18 : i32 to vector<2x128xi32>
    %59 = arith.cmpi eq, %57, %58 : vector<2x128xi32>
    %60 = vector.shape_cast %53 : vector<1x128xf32> to vector<1x128xf32>
    %61 = vector.broadcast %60 : vector<1x128xf32> to vector<2x128xf32>
    %62 = vector.shape_cast %56 : vector<1x128xf32> to vector<1x128xf32>
    %63 = vector.broadcast %62 : vector<1x128xf32> to vector<2x128xf32>
    %64 = arith.select %59, %61, %63 : vector<2x128xi1>, vector<2x128xf32>
    %c0_19 = arith.constant 0 : index
    %c0_20 = arith.constant 0 : index
    %65 = vector.load %arg3[%c0_19, %c0_20] : memref<128x4xf32, #tpu.memory_space<vmem>>, vector<128x4xf32>
    %cst_21 = arith.constant dense<0.000000e+00> : vector<2x4xf32>
    %66 = tpu.matmul %64, %65, %cst_21 {dimension_numbers = #tpu.dot_dimension_numbers<[1], [0], [0], [1], [0, 0, 1, 1], [], []>} : vector<2x128xf32>, vector<128x4xf32>, vector<2x4xf32> -> vector<2x4xf32>
    %67 = vector.extract_strided_slice %66 {offsets = [0, 0], sizes = [1, 4], strides = [1, 1]} : vector<2x4xf32> to vector<1x4xf32>
    %cst_22 = arith.constant 0.001953125 : f32
    %68 = vector.broadcast %cst_22 : f32 to vector<1x4xf32>
    %69 = arith.mulf %67, %68 : vector<1x4xf32>
    %70 = vector.extract_strided_slice %66 {offsets = [1, 0], sizes = [1, 4], strides = [1, 1]} : vector<2x4xf32> to vector<1x4xf32>
    %cst_23 = arith.constant 0.001953125 : f32
    %71 = vector.broadcast %cst_23 : f32 to vector<1x4xf32>
    %72 = arith.mulf %70, %71 : vector<1x4xf32>
    %73 = arith.mulf %69, %69 : vector<1x4xf32>
    %74 = arith.subf %72, %73 : vector<1x4xf32>
    %c0_24 = arith.constant 0 : index
    %c0_25 = arith.constant 0 : index
    %75 = vector.load %arg5[%c0_24, %c0_25] : memref<1x4xf32, #tpu.memory_space<vmem>>, vector<1x4xf32>
    %cst_26 = arith.constant 9.99999974E-6 : f32
    %76 = vector.broadcast %cst_26 : f32 to vector<1x4xf32>
    %77 = arith.addf %74, %76 : vector<1x4xf32>
    %78 = math.rsqrt %77 : vector<1x4xf32>
    %79 = arith.mulf %75, %78 : vector<1x4xf32>
    %c0_27 = arith.constant 0 : index
    %c0_28 = arith.constant 0 : index
    %80 = vector.load %arg6[%c0_27, %c0_28] : memref<1x4xf32, #tpu.memory_space<vmem>>, vector<1x4xf32>
    %81 = arith.mulf %69, %79 : vector<1x4xf32>
    %82 = arith.subf %80, %81 : vector<1x4xf32>
    %83 = tpu.iota {dimensions = array<i32: 0>} : vector<2x4xi32>
    %c0_i32_29 = arith.constant 0 : i32
    %84 = vector.broadcast %c0_i32_29 : i32 to vector<2x4xi32>
    %85 = arith.cmpi eq, %83, %84 : vector<2x4xi32>
    %86 = vector.shape_cast %79 : vector<1x4xf32> to vector<1x4xf32>
    %87 = vector.broadcast %86 : vector<1x4xf32> to vector<2x4xf32>
    %88 = vector.shape_cast %82 : vector<1x4xf32> to vector<1x4xf32>
    %89 = vector.broadcast %88 : vector<1x4xf32> to vector<2x4xf32>
    %90 = arith.select %85, %87, %89 : vector<2x4xi1>, vector<2x4xf32>
    %c0_30 = arith.constant 0 : index
    %c0_31 = arith.constant 0 : index
    %91 = vector.load %arg4[%c0_30, %c0_31] : memref<4x128xf32, #tpu.memory_space<vmem>>, vector<4x128xf32>
    %cst_32 = arith.constant dense<0.000000e+00> : vector<2x128xf32>
    %92 = tpu.matmul %90, %91, %cst_32 {dimension_numbers = #tpu.dot_dimension_numbers<[1], [0], [0], [1], [0, 0, 1, 1], [], []>} : vector<2x4xf32>, vector<4x128xf32>, vector<2x128xf32> -> vector<2x128xf32>
    %93 = vector.extract_strided_slice %92 {offsets = [0, 0], sizes = [1, 128], strides = [1, 1]} : vector<2x128xf32> to vector<1x128xf32>
    %94 = vector.broadcast %93 : vector<1x128xf32> to vector<32x128xf32>
    %95 = arith.mulf %51, %94 : vector<32x128xf32>
    %96 = vector.extract_strided_slice %92 {offsets = [1, 0], sizes = [1, 128], strides = [1, 1]} : vector<2x128xf32> to vector<1x128xf32>
    %97 = vector.broadcast %96 : vector<1x128xf32> to vector<32x128xf32>
    %98 = arith.addf %95, %97 : vector<32x128xf32>
    %cst_33 = arith.constant 0.00999999977 : f32
    %99 = vector.broadcast %cst_33 : f32 to vector<32x128xf32>
    %100 = arith.mulf %99, %98 : vector<32x128xf32>
    %101 = arith.maximumf %98, %100 : vector<32x128xf32>
    %102 = arith.truncf %101 : vector<32x128xf32> to vector<32x128xbf16>
    %c0_34 = arith.constant 0 : index
    %c0_35 = arith.constant 0 : index
    %103 = vector.load %arg2[%c0_34, %c0_35] : memref<128x384xbf16, #tpu.memory_space<vmem>>, vector<128x384xbf16>
    %cst_36 = arith.constant dense<0.000000e+00> : vector<32x384xf32>
    %104 = tpu.matmul %102, %103, %cst_36 {dimension_numbers = #tpu.dot_dimension_numbers<[1], [0], [0], [1], [0, 0, 1, 1], [], []>} : vector<32x128xbf16>, vector<128x384xbf16>, vector<32x384xf32> -> vector<32x384xf32>
    %105 = vector.extract_strided_slice %104 {offsets = [0, 0], sizes = [32, 128], strides = [1, 1]} : vector<32x384xf32> to vector<32x128xf32>
    %106 = vector.extract_strided_slice %104 {offsets = [0, 128], sizes = [32, 128], strides = [1, 1]} : vector<32x384xf32> to vector<32x128xf32>
    %107 = vector.extract_strided_slice %104 {offsets = [0, 256], sizes = [32, 128], strides = [1, 1]} : vector<32x384xf32> to vector<32x128xf32>
    %c1_i32_37 = arith.constant 1 : i32
    %108 = tpu.dynamic_rotate %105 by %c1_i32_37 dim 0 : vector<32x128xf32>, i32 -> vector<32x128xf32>
    %cst_38 = arith.constant 0.000000e+00 : f32
    %109 = vector.broadcast %cst_38 : f32 to vector<32x128xf32>
    %110 = arith.select %18, %108, %109 : vector<32x128xi1>, vector<32x128xf32>
    %c31_i32_39 = arith.constant 31 : i32
    %111 = tpu.dynamic_rotate %107 by %c31_i32_39 dim 0 : vector<32x128xf32>, i32 -> vector<32x128xf32>
    %cst_40 = arith.constant 0.000000e+00 : f32
    %112 = vector.broadcast %cst_40 : f32 to vector<32x128xf32>
    %113 = arith.select %36, %111, %112 : vector<32x128xi1>, vector<32x128xf32>
    %114 = arith.addf %106, %110 : vector<32x128xf32>
    %115 = arith.addf %114, %113 : vector<32x128xf32>
    %cst_41 = arith.constant dense<0.000000e+00> : vector<128xf32>
    %116 = vector.multi_reduction <add>, %115, %cst_41 [0] : vector<32x128xf32> to vector<128xf32>
    %117 = vector.shape_cast %116 : vector<128xf32> to vector<1x128xf32>
    %118 = arith.mulf %115, %115 : vector<32x128xf32>
    %cst_42 = arith.constant dense<0.000000e+00> : vector<128xf32>
    %119 = vector.multi_reduction <add>, %118, %cst_42 [0] : vector<32x128xf32> to vector<128xf32>
    %120 = vector.shape_cast %119 : vector<128xf32> to vector<1x128xf32>
    %121 = tpu.iota {dimensions = array<i32: 0>} : vector<2x128xi32>
    %c0_i32_43 = arith.constant 0 : i32
    %122 = vector.broadcast %c0_i32_43 : i32 to vector<2x128xi32>
    %123 = arith.cmpi eq, %121, %122 : vector<2x128xi32>
    %124 = vector.shape_cast %117 : vector<1x128xf32> to vector<1x128xf32>
    %125 = vector.broadcast %124 : vector<1x128xf32> to vector<2x128xf32>
    %126 = vector.shape_cast %120 : vector<1x128xf32> to vector<1x128xf32>
    %127 = vector.broadcast %126 : vector<1x128xf32> to vector<2x128xf32>
    %128 = arith.select %123, %125, %127 : vector<2x128xi1>, vector<2x128xf32>
    %c0_44 = arith.constant 0 : index
    %c0_45 = arith.constant 0 : index
    %129 = vector.load %arg3[%c0_44, %c0_45] : memref<128x4xf32, #tpu.memory_space<vmem>>, vector<128x4xf32>
    %cst_46 = arith.constant dense<0.000000e+00> : vector<2x4xf32>
    %130 = tpu.matmul %128, %129, %cst_46 {dimension_numbers = #tpu.dot_dimension_numbers<[1], [0], [0], [1], [0, 0, 1, 1], [], []>} : vector<2x128xf32>, vector<128x4xf32>, vector<2x4xf32> -> vector<2x4xf32>
    %131 = vector.extract_strided_slice %130 {offsets = [0, 0], sizes = [1, 4], strides = [1, 1]} : vector<2x4xf32> to vector<1x4xf32>
    %cst_47 = arith.constant 0.001953125 : f32
    %132 = vector.broadcast %cst_47 : f32 to vector<1x4xf32>
    %133 = arith.mulf %131, %132 : vector<1x4xf32>
    %134 = vector.extract_strided_slice %130 {offsets = [1, 0], sizes = [1, 4], strides = [1, 1]} : vector<2x4xf32> to vector<1x4xf32>
    %cst_48 = arith.constant 0.001953125 : f32
    %135 = vector.broadcast %cst_48 : f32 to vector<1x4xf32>
    %136 = arith.mulf %134, %135 : vector<1x4xf32>
    %137 = arith.mulf %133, %133 : vector<1x4xf32>
    %138 = arith.subf %136, %137 : vector<1x4xf32>
    %c0_49 = arith.constant 0 : index
    %c0_50 = arith.constant 0 : index
    %139 = vector.load %arg7[%c0_49, %c0_50] : memref<1x4xf32, #tpu.memory_space<vmem>>, vector<1x4xf32>
    %cst_51 = arith.constant 9.99999974E-6 : f32
    %140 = vector.broadcast %cst_51 : f32 to vector<1x4xf32>
    %141 = arith.addf %138, %140 : vector<1x4xf32>
    %142 = math.rsqrt %141 : vector<1x4xf32>
    %143 = arith.mulf %139, %142 : vector<1x4xf32>
    %c0_52 = arith.constant 0 : index
    %c0_53 = arith.constant 0 : index
    %144 = vector.load %arg8[%c0_52, %c0_53] : memref<1x4xf32, #tpu.memory_space<vmem>>, vector<1x4xf32>
    %145 = arith.mulf %133, %143 : vector<1x4xf32>
    %146 = arith.subf %144, %145 : vector<1x4xf32>
    %147 = tpu.iota {dimensions = array<i32: 0>} : vector<2x4xi32>
    %c0_i32_54 = arith.constant 0 : i32
    %148 = vector.broadcast %c0_i32_54 : i32 to vector<2x4xi32>
    %149 = arith.cmpi eq, %147, %148 : vector<2x4xi32>
    %150 = vector.shape_cast %143 : vector<1x4xf32> to vector<1x4xf32>
    %151 = vector.broadcast %150 : vector<1x4xf32> to vector<2x4xf32>
    %152 = vector.shape_cast %146 : vector<1x4xf32> to vector<1x4xf32>
    %153 = vector.broadcast %152 : vector<1x4xf32> to vector<2x4xf32>
    %154 = arith.select %149, %151, %153 : vector<2x4xi1>, vector<2x4xf32>
    %c0_55 = arith.constant 0 : index
    %c0_56 = arith.constant 0 : index
    %155 = vector.load %arg4[%c0_55, %c0_56] : memref<4x128xf32, #tpu.memory_space<vmem>>, vector<4x128xf32>
    %cst_57 = arith.constant dense<0.000000e+00> : vector<2x128xf32>
    %156 = tpu.matmul %154, %155, %cst_57 {dimension_numbers = #tpu.dot_dimension_numbers<[1], [0], [0], [1], [0, 0, 1, 1], [], []>} : vector<2x4xf32>, vector<4x128xf32>, vector<2x128xf32> -> vector<2x128xf32>
    %157 = vector.extract_strided_slice %156 {offsets = [0, 0], sizes = [1, 128], strides = [1, 1]} : vector<2x128xf32> to vector<1x128xf32>
    %158 = vector.broadcast %157 : vector<1x128xf32> to vector<32x128xf32>
    %159 = arith.mulf %115, %158 : vector<32x128xf32>
    %160 = vector.extract_strided_slice %156 {offsets = [1, 0], sizes = [1, 128], strides = [1, 1]} : vector<2x128xf32> to vector<1x128xf32>
    %161 = vector.broadcast %160 : vector<1x128xf32> to vector<32x128xf32>
    %162 = arith.addf %159, %161 : vector<32x128xf32>
    %c0_58 = arith.constant 0 : index
    %c0_59 = arith.constant 0 : index
    %163 = vector.load %arg0[%c0_58, %c0_59] : memref<32x128xf32, #tpu.memory_space<vmem>>, vector<32x128xf32>
    %164 = arith.addf %162, %163 : vector<32x128xf32>
    %cst_60 = arith.constant 0.00999999977 : f32
    %165 = vector.broadcast %cst_60 : f32 to vector<32x128xf32>
    %166 = arith.mulf %165, %164 : vector<32x128xf32>
    %167 = arith.maximumf %164, %166 : vector<32x128xf32>
    %c0_61 = arith.constant 0 : index
    %c0_62 = arith.constant 0 : index
    %168 = vector.load %arg9[%c0_61, %c0_62] : memref<32x128xf32, #tpu.memory_space<vmem>>, vector<32x128xf32>
    tpu.vector_store %arg9[%c0_61, %c0_62], %167 {strides = array<i32>} : memref<32x128xf32, #tpu.memory_space<vmem>>, vector<32x128xf32>,
    return
  }
}

</mosaic_0001>

<llo_original>
// kernel: tpu_custom_call.1
$region0: #{tpu_custom_call.1}
  #allocation0 [shape = 'u32[]', space=smem, size = 0x4, offset = 0x4, fixed_abs, tag = 'smem constant byte address 0x4 - core index']
  #allocation1 [shape = 'u32[144,128]{1,0:T(1,128)}', space=vmem, size = 0x12000, scoped, tag = 'internal scratch']
  %s0 = inlined_call_operand.hbm [shape: f32[32,128], index: 0, kind: input, shape index: {}, may-alias: {0,9}]
  %s1 = inlined_call_operand.vmem [shape: bf16[128,384], index: 1, kind: input, shape index: {}]
  %s2 = inlined_call_operand.hbm [shape: bf16[128,384], index: 2, kind: input, shape index: {}]
  %s3 = inlined_call_operand.vmem [shape: f32[128,4], index: 3, kind: input, shape index: {}]
  %s4 = inlined_call_operand.vmem [shape: f32[4,128], index: 4, kind: input, shape index: {}]
  %s5 = inlined_call_operand.vmem [shape: f32[1,4], index: 5, kind: input, shape index: {}]
  %s6 = inlined_call_operand.vmem [shape: f32[1,4], index: 6, kind: input, shape index: {}]
  %s7 = inlined_call_operand.vmem [shape: f32[1,4], index: 7, kind: input, shape index: {}]
  %s8 = inlined_call_operand.vmem [shape: f32[1,4], index: 8, kind: input, shape index: {}]
  %s9 = inlined_call_operand.hbm [shape: f32[32,128], index: 9, kind: output, shape index: {}, may-alias: {0,9}]
  %s10 = sld [smem:[#allocation0]]
  $region54: #{tpu_custom_call.1} parent=0
    _
  %s12 = ssub.s32 1, %s10
  %s13 = scalar_select 0, %s12, %s10
  $region1: #{tpu_custom_call.1} parent=0
    #allocation2 [shape = 'u8[16384]{0}', space=vmem, size = 0x4000, scoped, tag = 'input window, operand 0, single buffered']
    #allocation3 [shape = 's32[1]{0}', space=sflag, size = 0x4, scoped, tag = 'scoped memory for tpu_custom_call.1']
    #allocation4 [shape = 's32[1]{0}', space=sflag, size = 0x4, scoped, tag = 'scoped memory for tpu_custom_call.1']
    #allocation5 [shape = 'u8[98304]{0}', space=vmem, size = 0x18000, scoped, tag = 'input window, operand 2, single buffered']
    #allocation6 [shape = 's32[1]{0}', space=sflag, size = 0x4, scoped, tag = 'scoped memory for tpu_custom_call.1']
    #allocation7 [shape = 'u8[16384]{0}', space=vmem, size = 0x4000, scoped, tag = 'output window, operand 0, single buffered']
    %14 = vsyncpa [#allocation3], 0
    %15 = vsyncpa [#allocation6], 0
    %16 = vsyncpa [#allocation4], 0
    // Predicated region
    $region2: #{tpu_custom_call.1} parent=1 // pred_check
      _
    $region3: #{tpu_custom_call.1} parent=1 // pred_check_branch
      %18 = sbr.rel (0) target = $region5
    $region4: #{tpu_custom_call.1} parent=1 // pred_region
      %s20 = ssub.s32 512, 512
      %21 = vsyncadd [#allocation3], %s20
      %s22 = sshll.u32 [#allocation2], 4
      %s23 = int_to_ptr.vmem [resolvable:$true] %s22
      %28 = dma.hbm_to_vmem [thread:$0]  %s0, 512, %s23, [#allocation3], 128, 128, 8
    $region5: #{tpu_custom_call.1} parent=1 // pred_fallthru
      _
    // Predicated region
    $region6: #{tpu_custom_call.1} parent=1 // pred_check
      _
    $region7: #{tpu_custom_call.1} parent=1 // pred_check_branch
      %30 = sbr.rel (0) target = $region9
    $region8: #{tpu_custom_call.1} parent=1 // pred_region
      _
    $region9: #{tpu_custom_call.1} parent=1 // pred_fallthru
      _
    // Predicated region
    $region10: #{tpu_custom_call.1} parent=1 // pred_check
      _
    $region11: #{tpu_custom_call.1} parent=1 // pred_check_branch
      %32 = sbr.rel (0) target = $region13
    $region12: #{tpu_custom_call.1} parent=1 // pred_region
      %s34 = ssub.s32 3072, 3072
      %35 = vsyncadd [#allocation6], %s34
      %s36 = sshll.u32 [#allocation5], 4
      %s37 = int_to_ptr.vmem [resolvable:$true] %s36
      %42 = dma.hbm_to_vmem [thread:$0]  %s2, 3072, %s37, [#allocation6], 192, 192, 12
    $region13: #{tpu_custom_call.1} parent=1 // pred_fallthru
      _
    // Predicated region
    $region14: #{tpu_custom_call.1} parent=1 // pred_check
      _
    $region15: #{tpu_custom_call.1} parent=1 // pred_check_branch
      %44 = sbr.rel (0) target = $region17
    $region16: #{tpu_custom_call.1} parent=1 // pred_region
      _
    $region17: #{tpu_custom_call.1} parent=1 // pred_fallthru
      _
    // Predicated region
    $region18: #{tpu_custom_call.1} parent=1 // pred_check
      _
    $region19: #{tpu_custom_call.1} parent=1 // pred_check_branch
      %46 = sbr.rel (0) target = $region21
    $region20: #{tpu_custom_call.1} parent=1 // pred_region
      _
    $region21: #{tpu_custom_call.1} parent=1 // pred_fallthru
      _
    // Predicated region
    $region22: #{tpu_custom_call.1} parent=1 // pred_check
      _
    $region23: #{tpu_custom_call.1} parent=1 // pred_check_branch
      %48 = sbr.rel (0) target = $region25
    $region24: #{tpu_custom_call.1} parent=1 // pred_region
      _
    $region25: #{tpu_custom_call.1} parent=1 // pred_fallthru
      _
    // Predicated region
    $region26: #{tpu_custom_call.1} parent=1 // pred_check
      _
    $region27: #{tpu_custom_call.1} parent=1 // pred_check_branch
      %50 = sbr.rel (0) target = $region29
    $region28: #{tpu_custom_call.1} parent=1 // pred_region
      _
    $region29: #{tpu_custom_call.1} parent=1 // pred_fallthru
      _
    // Predicated region
    $region30: #{tpu_custom_call.1} parent=1 // pred_check
      _
    $region31: #{tpu_custom_call.1} parent=1 // pred_check_branch
      %52 = sbr.rel (0) target = $region33
    $region32: #{tpu_custom_call.1} parent=1 // pred_region
      _
    $region33: #{tpu_custom_call.1} parent=1 // pred_fallthru
      _
    // Predicated region
    $region34: #{tpu_custom_call.1} parent=1 // pred_check
      _
    $region35: #{tpu_custom_call.1} parent=1 // pred_check_branch
      %54 = sbr.rel (0) target = $region37
    $region36: #{tpu_custom_call.1} parent=1 // pred_region
      _
    $region37: #{tpu_custom_call.1} parent=1 // pred_fallthru
      _
    // Predicated region
    $region38: #{tpu_custom_call.1} parent=1 // pred_check
      _
    $region39: #{tpu_custom_call.1} parent=1 // pred_check_branch
      %56 = sbr.rel (0) target = $region41
    $region40: #{tpu_custom_call.1} parent=1 // pred_region
      %57 = dma.done [#allocation3], 512
    $region41: #{tpu_custom_call.1} parent=1 // pred_fallthru
      _
    // Predicated region
    $region42: #{tpu_custom_call.1} parent=1 // pred_check
      _
    $region43: #{tpu_custom_call.1} parent=1 // pred_check_branch
      %59 = sbr.rel (0) target = $region45
    $region44: #{tpu_custom_call.1} parent=1 // pred_region
      %60 = dma.done [#allocation6], 3072
    $region45: #{tpu_custom_call.1} parent=1 // pred_fallthru
      _
    %v62 = vlaneseq
    %v63 = vshrl.u32 %v62, 7
    %v64 = vadd.s32 %v63, 8
    %v65 = vadd.s32 %v63, 16
    %v66 = vadd.s32 %v63, 24
    %vm67 = vcmp.lt.s32.totalorder %v63, 0
    %v68 = vsub.s32 0, %v63
    %v69 = vsel %vm67, %v68, %v63
    %v70 = vshrl.u32 %v69, 4
    %v71 = vand.u32 %v69, 15
    %v72 = vsub.s32 0, %v71
    %v73 = vsel %vm67, %v72, %v71
    %vm74 = vcmp.lt.s32.totalorder %v64, 0
    %v75 = vsub.s32 0, %v64
    %v76 = vsel %vm74, %v75, %v64
    %v77 = vshrl.u32 %v76, 4
    %v78 = vand.u32 %v76, 15
    %v79 = vsub.s32 0, %v78
    %v80 = vsel %vm74, %v79, %v78
    %vm81 = vcmp.lt.s32.totalorder %v65, 0
    %v82 = vsub.s32 0, %v65
    %v83 = vsel %vm81, %v82, %v65
    %v84 = vshrl.u32 %v83, 4
    %v85 = vand.u32 %v83, 15
    %v86 = vsub.s32 0, %v85
    %v87 = vsel %vm81, %v86, %v85
    %vm88 = vcmp.lt.s32.totalorder %v66, 0
    %v89 = vsub.s32 0, %v66
    %v90 = vsel %vm88, %v89, %v66
    %v91 = vshrl.u32 %v90, 4
    %v92 = vand.u32 %v90, 15
    %v93 = vsub.s32 0, %v92
    %v94 = vsel %vm88, %v93, %v92
    %vm95 = vcmp.ne.s32.totalorder %v73, 0
    %vm96 = vcmp.ne.s32.totalorder %v80, 0
    %vm97 = vcmp.ne.s32.totalorder %v87, 0
    %vm98 = vcmp.ne.s32.totalorder %v94, 0
    %vm99 = vcmp.lt.s32.totalorder %v73, 0
    %vm100 = vcmp.lt.s32.totalorder %v80, 0
    %vm101 = vcmp.lt.s32.totalorder %v87, 0
    %vm102 = vcmp.lt.s32.totalorder %v94, 0
    %vm103 = vmand %vm99, %vm95
    %vm104 = vmand %vm100, %vm96
    %vm105 = vmand %vm101, %vm97
    %vm106 = vmand %vm102, %vm98
    %v107 = vadd.s32 %v73, 16
    %v108 = vadd.s32 %v80, 16
    %v109 = vadd.s32 %v87, 16
    %v110 = vadd.s32 %v94, 16
    %v111 = vsel %vm103, %v107, %v73
    %v112 = vsel %vm104, %v108, %v80
    %v113 = vsel %vm105, %v109, %v87
    %v114 = vsel %vm106, %v110, %v94
    %vm115 = vcmp.ne.s32.totalorder %v111, 0
    %vm116 = vcmp.ne.s32.totalorder %v112, 0
    %vm117 = vcmp.ne.s32.totalorder %v113, 0
    %vm118 = vcmp.ne.s32.totalorder %v114, 0
    %vm119 = vcmp.ne.s32.totalorder %v111, 15
    %vm120 = vcmp.ne.s32.totalorder %v112, 15
    %vm121 = vcmp.ne.s32.totalorder %v113, 15
    %vm122 = vcmp.ne.s32.totalorder %v114, 15
    %v123 = vld [vmem:[#allocation2] sm:$0xff]
    %v124 = vld [vmem:[#allocation2 + $0x8] sm:$0xff]
    %v125 = vld [vmem:[#allocation2 + $0x10] sm:$0xff]
    %v126 = vld [vmem:[#allocation2 + $0x18] sm:$0xff]
    %v127 = vpack.c.bf16 %v124, %v123
    %v128 = vpack.c.bf16 %v126, %v125
    %v129 = vld [vmem:[%s1] sm:$0xff]
    %v130 = vld [vmem:[%s1 + $0x8] sm:$0xf]
    %v131 = vld [vmem:[%s1 + $0xc] sm:$0xff]
    %v132 = vld [vmem:[%s1 + $0x14] sm:$0xf]
    %v133 = vld [vmem:[%s1 + $0x18] sm:$0xff]
    %v134 = vld [vmem:[%s1 + $0x20] sm:$0xf]
    %v135 = vld [vmem:[%s1 + $0x24] sm:$0xff]
    %v136 = vld [vmem:[%s1 + $0x2c] sm:$0xf]
    %v137 = vld [vmem:[%s1 + $0x30] sm:$0xff]
    %v138 = vld [vmem:[%s1 + $0x38] sm:$0xf]
    %v139 = vld [vmem:[%s1 + $0x3c] sm:$0xff]
    %v140 = vld [vmem:[%s1 + $0x44] sm:$0xf]
    %v141 = vld [vmem:[%s1 + $0x48] sm:$0xff]
    %v142 = vld [vmem:[%s1 + $0x50] sm:$0xf]
    %v143 = vld [vmem:[%s1 + $0x54] sm:$0xff]
    %v144 = vld [vmem:[%s1 + $0x5c] sm:$0xf]
    %v145 = vld [vmem:[%s1 + $0x60] sm:$0xff]
    %v146 = vld [vmem:[%s1 + $0x68] sm:$0xf]
    %v147 = vld [vmem:[%s1 + $0x6c] sm:$0xff]
    %v148 = vld [vmem:[%s1 + $0x74] sm:$0xf]
    %v149 = vld [vmem:[%s1 + $0x78] sm:$0xff]
    %v150 = vld [vmem:[%s1 + $0x80] sm:$0xf]
    %v151 = vld [vmem:[%s1 + $0x84] sm:$0xff]
    %v152 = vld [vmem:[%s1 + $0x8c] sm:$0xf]
    %v153 = vld [vmem:[%s1 + $0x90] sm:$0xff]
    %v154 = vld [vmem:[%s1 + $0x98] sm:$0xf]
    %v155 = vld [vmem:[%s1 + $0x9c] sm:$0xff]
    %v156 = vld [vmem:[%s1 + $0xa4] sm:$0xf]
    %v157 = vld [vmem:[%s1 + $0xa8] sm:$0xff]
    %v158 = vld [vmem:[%s1 + $0xb0] sm:$0xf]
    %v159 = vld [vmem:[%s1 + $0xb4] sm:$0xff]
    %v160 = vld [vmem:[%s1 + $0xbc] sm:$0xf]
    %v193 = vunpack.c.l.b16 %v129
    %v194 = vunpack.c.h.b16 %v129
    %v195 = vunpack.c.l.b16 %v130
    %v196 = vunpack.c.l.b16 %v131
    %v197 = vunpack.c.h.b16 %v131
    %v198 = vunpack.c.l.b16 %v132
    %v199 = vunpack.c.l.b16 %v133
    %v200 = vunpack.c.h.b16 %v133
    %v201 = vunpack.c.l.b16 %v134
    %v202 = vunpack.c.l.b16 %v135
    %v203 = vunpack.c.h.b16 %v135
    %v204 = vunpack.c.l.b16 %v136
    %v205 = vunpack.c.l.b16 %v137
    %v206 = vunpack.c.h.b16 %v137
    %v207 = vunpack.c.l.b16 %v138
    %v208 = vunpack.c.l.b16 %v139
    %v209 = vunpack.c.h.b16 %v139
    %v210 = vunpack.c.l.b16 %v140
    %v211 = vunpack.c.l.b16 %v141
    %v212 = vunpack.c.h.b16 %v141
    %v213 = vunpack.c.l.b16 %v142
    %v214 = vunpack.c.l.b16 %v143
    %v215 = vunpack.c.h.b16 %v143
    %v216 = vunpack.c.l.b16 %v144
    %v217 = vunpack.c.l.b16 %v145
    %v218 = vunpack.c.h.b16 %v145
    %v219 = vunpack.c.l.b16 %v146
    %v220 = vunpack.c.l.b16 %v147
    %v221 = vunpack.c.h.b16 %v147
    %v222 = vunpack.c.l.b16 %v148
    %v223 = vunpack.c.l.b16 %v149
    %v224 = vunpack.c.h.b16 %v149
    %v225 = vunpack.c.l.b16 %v150
    %v226 = vunpack.c.l.b16 %v151
    %v227 = vunpack.c.h.b16 %v151
    %v228 = vunpack.c.l.b16 %v152
    %v229 = vunpack.c.l.b16 %v153
    %v230 = vunpack.c.h.b16 %v153
    %v231 = vunpack.c.l.b16 %v154
    %v232 = vunpack.c.l.b16 %v155
    %v233 = vunpack.c.h.b16 %v155
    %v234 = vunpack.c.l.b16 %v156
    %v235 = vunpack.c.l.b16 %v157
    %v236 = vunpack.c.h.b16 %v157
    %v237 = vunpack.c.l.b16 %v158
    %v238 = vunpack.c.l.b16 %v159
    %v239 = vunpack.c.h.b16 %v159
    %v240 = vunpack.c.l.b16 %v160
    %v241 = vpack.c.b16 %v196, %v193
    %v242 = vpack.c.b16 %v197, %v194
    %v243 = vpack.c.b16 %v198, %v195
    %v244 = vpack.c.b16 %v202, %v199
    %v245 = vpack.c.b16 %v203, %v200
    %v246 = vpack.c.b16 %v204, %v201
    %v247 = vpack.c.b16 %v208, %v205
    %v248 = vpack.c.b16 %v209, %v206
    %v249 = vpack.c.b16 %v210, %v207
    %v250 = vpack.c.b16 %v214, %v211
    %v251 = vpack.c.b16 %v215, %v212
    %v252 = vpack.c.b16 %v216, %v213
    %v253 = vpack.c.b16 %v220, %v217
    %v254 = vpack.c.b16 %v221, %v218
    %v255 = vpack.c.b16 %v222, %v219
    %v256 = vpack.c.b16 %v226, %v223
    %v257 = vpack.c.b16 %v227, %v224
    %v258 = vpack.c.b16 %v228, %v225
    %v259 = vpack.c.b16 %v232, %v229
    %v260 = vpack.c.b16 %v233, %v230
    %v261 = vpack.c.b16 %v234, %v231
    %v262 = vpack.c.b16 %v238, %v235
    %v263 = vpack.c.b16 %v239, %v236
    %v264 = vpack.c.b16 %v240, %v237
    %289 = vmatprep.subr.bf16.mxu0 %v263
    %290 = vmatpush1.bf16.msra.mxu0 %v262
    %291 = vmatprep.subr.bf16.mxu0 %v260
    %292 = vmatpush1.bf16.msra.mxu0 %v259
    %293 = vmatprep.subr.bf16.mxu0 %v257
    %294 = vmatpush1.bf16.msra.mxu0 %v256
    %295 = vmatprep.subr.bf16.mxu0 %v254
    %296 = vmatpush1.bf16.msra.mxu0 %v253
    %297 = vmatprep.subr.bf16.mxu0 %v251
    %298 = vmatpush1.bf16.msra.mxu0 %v250
    %299 = vmatprep.subr.bf16.mxu0 %v248
    %300 = vmatpush1.bf16.msra.mxu0 %v247
    %301 = vmatprep.subr.bf16.mxu0 %v245
    %302 = vmatpush1.bf16.msra.mxu0 %v244
    %303 = vmatprep.subr.bf16.mxu0 %v242
    %304 = vmatpush1.bf16.msra.mxu0 %v241
    %305 = vmatprep.subr.bf16.mxu0 0
    %306 = vmatpush2.bf16.msra.mxu0 0
    %307 = vmatprep.subr.bf16.mxu0 0
    %308 = vmatpush2.bf16.msra.mxu0 0
    %309 = vmatprep.subr.bf16.mxu0 0
    %310 = vmatpush2.bf16.msra.mxu0 0
    %311 = vmatprep.subr.bf16.mxu0 0
    %312 = vmatpush2.bf16.msra.mxu0 0
    %313 = vmatprep.subr.bf16.mxu0 0
    %314 = vmatpush2.bf16.msra.mxu0 0
    %315 = vmatprep.subr.bf16.mxu0 0
    %316 = vmatpush2.bf16.msra.mxu0 0
    %317 = vmatprep.subr.bf16.mxu0 0
    %318 = vmatpush2.bf16.msra.mxu0 0
    %319 = vmatprep.subr.bf16.mxu0 0
    %320 = vmatpush2.bf16.msra.mxu0 0
    %321 = vmatprep.mubr.bf16.mxu0 0
    %322 = vmatmul.mubr.bf16.gmra.mxu0 %v127
    %v323 = vpop.f32.mrf.mxu0
    %v324 = vadd.f32 0.0, %v323
    %v325 = vpop.f32.mrf.mxu0
    %v326 = vadd.f32 0.0, %v325
    %v327 = vpop.f32.mrf.mxu0
    %v328 = vadd.f32 0.0, %v327
    %v329 = vpop.f32.mrf.mxu0
    %v330 = vadd.f32 0.0, %v329
    %331 = vmatprep.mubr.bf16.mxu0 0
    %332 = vmatmul.mubr.bf16.gmra.mxu0 %v128
    %v333 = vpop.f32.mrf.mxu0
    %v334 = vadd.f32 0.0, %v333
    %v335 = vpop.f32.mrf.mxu0
    %v336 = vadd.f32 0.0, %v335
    %v337 = vpop.f32.mrf.mxu0
    %v338 = vadd.f32 0.0, %v337
    %v339 = vpop.f32.mrf.mxu0
    %v340 = vadd.f32 0.0, %v339
    %341 = vdwg.mxu0
    %342 = vmatprep.subr.bf16.mxu0 0
    %343 = vmatpush1.bf16.msra.mxu0 %v264
    %344 = vmatprep.subr.bf16.mxu0 0
    %345 = vmatpush1.bf16.msra.mxu0 %v261
    %346 = vmatprep.subr.bf16.mxu0 0
    %347 = vmatpush1.bf16.msra.mxu0 %v258
    %348 = vmatprep.subr.bf16.mxu0 0
    %349 = vmatpush1.bf16.msra.mxu0 %v255
    %350 = vmatprep.subr.bf16.mxu0 0
    %351 = vmatpush1.bf16.msra.mxu0 %v252
    %352 = vmatprep.subr.bf16.mxu0 0
    %353 = vmatpush1.bf16.msra.mxu0 %v249
    %354 = vmatprep.subr.bf16.mxu0 0
    %355 = vmatpush1.bf16.msra.mxu0 %v246
    %356 = vmatprep.subr.bf16.mxu0 0
    %357 = vmatpush1.bf16.msra.mxu0 %v243
    %358 = vmatprep.subr.bf16.mxu0 0
    %359 = vmatpush2.bf16.msra.mxu0 0
    %360 = vmatprep.subr.bf16.mxu0 0
    %361 = vmatpush2.bf16.msra.mxu0 0
    %362 = vmatprep.subr.bf16.mxu0 0
    %363 = vmatpush2.bf16.msra.mxu0 0
    %364 = vmatprep.subr.bf16.mxu0 0
    %365 = vmatpush2.bf16.msra.mxu0 0
    %366 = vmatprep.subr.bf16.mxu0 0
    %367 = vmatpush2.bf16.msra.mxu0 0
    %368 = vmatprep.subr.bf16.mxu0 0
    %369 = vmatpush2.bf16.msra.mxu0 0
    %370 = vmatprep.subr.bf16.mxu0 0
    %371 = vmatpush2.bf16.msra.mxu0 0
    %372 = vmatprep.subr.bf16.mxu0 0
    %373 = vmatpush2.bf16.msra.mxu0 0
    %374 = vmatprep.mubr.bf16.mxu0 0
    %375 = vmatmul.mubr.bf16.gmra.mxu0 %v127
    %v376 = vpop.f32.mrf.mxu0
    %v377 = vadd.f32 0.0, %v376
    %v378 = vpop.f32.mrf.mxu0
    %v379 = vpop.f32.mrf.mxu0
    %v380 = vadd.f32 0.0, %v379
    %v381 = vpop.f32.mrf.mxu0
    %382 = vmatprep.mubr.bf16.mxu0 0
    %383 = vmatmul.mubr.bf16.gmra.mxu0 %v128
    %v384 = vpop.f32.mrf.mxu0
    %v385 = vadd.f32 0.0, %v384
    %v386 = vpop.f32.mrf.mxu0
    %v387 = vpop.f32.mrf.mxu0
    %v388 = vadd.f32 0.0, %v387
    %v389 = vpop.f32.mrf.mxu0
    %390 = vdwg.mxu0
    %v391 = vrot.slane %v324, 7
    %v392 = vrot.slane %v328, 7
    %v393 = vrot.slane %v334, 7
    %v394 = vrot.slane %v338, 7
    %vm395 = vcmp.lt.s32.totalorder %v63, 1
    %v396 = vsel %vm395, %v393, %v394
    %v397 = vsel %vm395, %v392, %v393
    %v398 = vsel %vm395, %v391, %v392
    %v399 = vsel %vm395, %v394, %v391
    %v400 = vsel %vm115, %v399, 0.0
    %v401 = vsel %vm116, %v398, 0.0
    %v402 = vsel %vm117, %v397, 0.0
    %v403 = vsel %vm118, %v396, 0.0
    %v404 = vrot.slane %v377, 1
    %v405 = vrot.slane %v380, 1
    %v406 = vrot.slane %v385, 1
    %v407 = vrot.slane %v388, 1
    %vm408 = vcmp.lt.s32.totalorder %v63, 7
    %v409 = vsel %vm408, %v406, %v407
    %v410 = vsel %vm408, %v405, %v406
    %v411 = vsel %vm408, %v404, %v405
    %v412 = vsel %vm408, %v407, %v404
    %v413 = vsel %vm119, %v411, 0.0
    %v414 = vsel %vm120, %v410, 0.0
    %v415 = vsel %vm121, %v409, 0.0
    %v416 = vsel %vm122, %v412, 0.0
    %v417 = vadd.f32 %v326, %v400
    %v418 = vadd.f32 %v330, %v401
    %v419 = vadd.f32 %v336, %v402
    %v420 = vadd.f32 %v340, %v403
    %v421 = vadd.f32 %v417, %v413
    %v422 = vadd.f32 %v418, %v414
    %v423 = vadd.f32 %v419, %v415
    %v424 = vadd.f32 %v420, %v416
    %v425 = vadd.f32 %v421, %v422
    %v426 = vadd.f32 %v425, %v423
    %v427 = vadd.f32 %v426, %v424
    %v428 = vrot.slane %v427, 4
    %v429 = vadd.f32 %v427, %v428
    %v430 = vrot.slane %v429, 2
    %v431 = vadd.f32 %v429, %v430
    %v432 = vrot.slane %v431, 1
    %v433 = vadd.f32 %v431, %v432
    %v434 = vmul.f32 %v421, %v421
    %v435 = vmul.f32 %v422, %v422
    %v436 = vmul.f32 %v423, %v423
    %v437 = vmul.f32 %v424, %v424
    %v438 = vadd.f32 %v434, %v435
    %v439 = vadd.f32 %v438, %v436
    %v440 = vadd.f32 %v439, %v437
    %v441 = vrot.slane %v440, 4
    %v442 = vadd.f32 %v440, %v441
    %v443 = vrot.slane %v442, 2
    %v444 = vadd.f32 %v442, %v443
    %v445 = vrot.slane %v444, 1
    %v446 = vadd.f32 %v444, %v445
    %vm447 = vcmp.eq.s32.totalorder %v63, 0
    %v448 = vsel %vm447, %v433, %v446
    %v449 = vld [vmem:[%s3] sm:$0xff]
    %v450 = vld [vmem:[%s3 + $0x8] sm:$0xff]
    %v451 = vld [vmem:[%s3 + $0x10] sm:$0xff]
    %v452 = vld [vmem:[%s3 + $0x18] sm:$0xff]
    %v453 = vld [vmem:[%s3 + $0x20] sm:$0xff]
    %v454 = vld [vmem:[%s3 + $0x28] sm:$0xff]
    %v455 = vld [vmem:[%s3 + $0x30] sm:$0xff]
    %v456 = vld [vmem:[%s3 + $0x38] sm:$0xff]
    %v457 = vld [vmem:[%s3 + $0x40] sm:$0xff]
    %v458 = vld [vmem:[%s3 + $0x48] sm:$0xff]
    %v459 = vld [vmem:[%s3 + $0x50] sm:$0xff]
    %v460 = vld [vmem:[%s3 + $0x58] sm:$0xff]
    %v461 = vld [vmem:[%s3 + $0x60] sm:$0xff]
    %v462 = vld [vmem:[%s3 + $0x68] sm:$0xff]
    %v463 = vld [vmem:[%s3 + $0x70] sm:$0xff]
    %v464 = vld [vmem:[%s3 + $0x78] sm:$0xff]
    %465 = vmatprep.subr.mxu0 0.0
    %466 = vmatpush1.msra.mxu0 %v464
    %467 = vmatprep.subr.mxu0 0.0
    %468 = vmatpush1.msra.mxu0 %v463
    %469 = vmatprep.subr.mxu0 0.0
    %470 = vmatpush1.msra.mxu0 %v462
    %471 = vmatprep.subr.mxu0 0.0
    %472 = vmatpush1.msra.mxu0 %v461
    %473 = vmatprep.subr.mxu0 0.0
    %474 = vmatpush1.msra.mxu0 %v460
    %475 = vmatprep.subr.mxu0 0.0
    %476 = vmatpush1.msra.mxu0 %v459
    %477 = vmatprep.subr.mxu0 0.0
    %478 = vmatpush1.msra.mxu0 %v458
    %479 = vmatprep.subr.mxu0 0.0
    %480 = vmatpush1.msra.mxu0 %v457
    %481 = vmatprep.subr.mxu0 0.0
    %482 = vmatpush1.msra.mxu0 %v456
    %483 = vmatprep.subr.mxu0 0.0
    %484 = vmatpush1.msra.mxu0 %v455
    %485 = vmatprep.subr.mxu0 0.0
    %486 = vmatpush1.msra.mxu0 %v454
    %487 = vmatprep.subr.mxu0 0.0
    %488 = vmatpush1.msra.mxu0 %v453
    %489 = vmatprep.subr.mxu0 0.0
    %490 = vmatpush1.msra.mxu0 %v452
    %491 = vmatprep.subr.mxu0 0.0
    %492 = vmatpush1.msra.mxu0 %v451
    %493 = vmatprep.subr.mxu0 0.0
    %494 = vmatpush1.msra.mxu0 %v450
    %495 = vmatprep.subr.mxu0 0.0
    %496 = vmatpush1.msra.mxu0 %v449
    %497 = vmatprep.subr.mxu0 0.0
    %498 = vmatpush2.msra.mxu0 0.0
    %499 = vmatprep.subr.mxu0 0.0
    %500 = vmatpush2.msra.mxu0 0.0
    %501 = vmatprep.subr.mxu0 0.0
    %502 = vmatpush2.msra.mxu0 0.0
    %503 = vmatprep.subr.mxu0 0.0
    %504 = vmatpush2.msra.mxu0 0.0
    %505 = vmatprep.subr.mxu0 0.0
    %506 = vmatpush2.msra.mxu0 0.0
    %507 = vmatprep.subr.mxu0 0.0
    %508 = vmatpush2.msra.mxu0 0.0
    %509 = vmatprep.subr.mxu0 0.0
    %510 = vmatpush2.msra.mxu0 0.0
    %511 = vmatprep.subr.mxu0 0.0
    %512 = vmatpush2.msra.mxu0 0.0
    %513 = vmatprep.subr.mxu0 0.0
    %514 = vmatpush2.msra.mxu0 0.0
    %515 = vmatprep.subr.mxu0 0.0
    %516 = vmatpush2.msra.mxu0 0.0
    %517 = vmatprep.subr.mxu0 0.0
    %518 = vmatpush2.msra.mxu0 0.0
    %519 = vmatprep.subr.mxu0 0.0
    %520 = vmatpush2.msra.mxu0 0.0
    %521 = vmatprep.subr.mxu0 0.0
    %522 = vmatpush2.msra.mxu0 0.0
    %523 = vmatprep.subr.mxu0 0.0
    %524 = vmatpush2.msra.mxu0 0.0
    %525 = vmatprep.subr.mxu0 0.0
    %526 = vmatpush2.msra.mxu0 0.0
    %527 = vmatprep.subr.mxu0 0.0
    %528 = vmatpush2.msra.mxu0 0.0
    %529 = vmatprep.mubr.f32.mxu0 0.0
    %530 = vmatmul.mubr.f32.gmra.mxu0 %v448
    %v531 = vpop.f32.mrf.mxu0
    %v532 = vadd.f32 0.0, %v531
    %v533 = vpop.f32.mrf.mxu0
    %534 = vdwg.mxu0
    %v535 = vmul.f32 %v532, 0.001953125
    %v536 = vmul.f32 %v535, %v535
    %v538 = vrot.slane %v536, 7
    %v540 = vsub.f32 %v535, %v538
    %v541 = vld [vmem:[%s5] sm:$0x1]
    %v542 = vadd.f32 %v540, 1e-05
    %v543 = vrsqrt.pop %v542
    %v546 = vunpack.c.l.s4 1966171168
    %v547 = vunpack.c.0.s8 %v546
    %v548 = vlaneseq
    %v549 = vshrl.u32 %v548, 7
    %v550 = vsub.s32 %v547, %v549
    %v551 = vrot.slane %v543, %v550
    %v552 = vcombine.high %v551, %v551
    %v554 = vunpack.c.l.s4 1966171168
    %v555 = vunpack.c.0.s8 %v554
    %v556 = vlaneseq
    %v557 = vshrl.u32 %v556, 7
    %v558 = vsub.s32 %v555, %v557
    %v559 = vrot.slane %v552, %v558
    %v561 = vmul.f32 %v541, %v559
    %v562 = vld [vmem:[%s6] sm:$0x1]
    %v563 = vmul.f32 %v535, %v561
    %v564 = vsub.f32 %v562, %v563
    %v566 = vlaneseq
    %v567 = vshrl.u32 %v566, 7
    %v568 = vsub.s32 0, %v567
    %v569 = vrot.slane %v561, %v568
    %v572 = vlaneseq
    %v573 = vshrl.u32 %v572, 7
    %v574 = vsub.s32 0, %v573
    %v575 = vrot.slane %v564, %v574
    %v577 = vsel %vm447, %v569, %v575
    %v578 = vld [vmem:[%s4] sm:$0xf]
    %vm579 = vcmask 31744
    %v581 = vsel %vm579, %v577, 0
    %vm583 = vcmask 1043456
    %v585 = vsel %vm583, %v578, 0
    %587 = vmatprep.subr.mxu0 0.0
    %588 = vmatpush1.msra.mxu0 0.0
    %589 = vmatprep.subr.mxu0 0.0
    %590 = vmatpush1.msra.mxu0 0.0
    %591 = vmatprep.subr.mxu0 0.0
    %592 = vmatpush1.msra.mxu0 0.0
    %593 = vmatprep.subr.mxu0 0.0
    %594 = vmatpush1.msra.mxu0 0.0
    %595 = vmatprep.subr.mxu0 0.0
    %596 = vmatpush1.msra.mxu0 0.0
    %597 = vmatprep.subr.mxu0 0.0
    %598 = vmatpush1.msra.mxu0 0.0
    %599 = vmatprep.subr.mxu0 0.0
    %600 = vmatpush1.msra.mxu0 0.0
    %601 = vmatprep.subr.mxu0 0.0
    %602 = vmatpush1.msra.mxu0 0.0
    %603 = vmatprep.subr.mxu0 0.0
    %604 = vmatpush1.msra.mxu0 0.0
    %605 = vmatprep.subr.mxu0 0.0
    %606 = vmatpush1.msra.mxu0 0.0
    %607 = vmatprep.subr.mxu0 0.0
    %608 = vmatpush1.msra.mxu0 0.0
    %609 = vmatprep.subr.mxu0 0.0
    %610 = vmatpush1.msra.mxu0 0.0
    %611 = vmatprep.subr.mxu0 0.0
    %612 = vmatpush1.msra.mxu0 0.0
    %613 = vmatprep.subr.mxu0 0.0
    %614 = vmatpush1.msra.mxu0 0.0
    %615 = vmatprep.subr.mxu0 0.0
    %616 = vmatpush1.msra.mxu0 0.0
    %617 = vmatprep.subr.mxu0 0.0
    %618 = vmatpush1.msra.mxu0 %v585
    %619 = vmatprep.subr.mxu0 0.0
    %620 = vmatpush2.msra.mxu0 0.0
    %621 = vmatprep.subr.mxu0 0.0
    %622 = vmatpush2.msra.mxu0 0.0
    %623 = vmatprep.subr.mxu0 0.0
    %624 = vmatpush2.msra.mxu0 0.0
    %625 = vmatprep.subr.mxu0 0.0
    %626 = vmatpush2.msra.mxu0 0.0
    %627 = vmatprep.subr.mxu0 0.0
    %628 = vmatpush2.msra.mxu0 0.0
    %629 = vmatprep.subr.mxu0 0.0
    %630 = vmatpush2.msra.mxu0 0.0
    %631 = vmatprep.subr.mxu0 0.0
    %632 = vmatpush2.msra.mxu0 0.0
    %633 = vmatprep.subr.mxu0 0.0
    %634 = vmatpush2.msra.mxu0 0.0
    %635 = vmatprep.subr.mxu0 0.0
    %636 = vmatpush2.msra.mxu0 0.0
    %637 = vmatprep.subr.mxu0 0.0
    %638 = vmatpush2.msra.mxu0 0.0
    %639 = vmatprep.subr.mxu0 0.0
    %640 = vmatpush2.msra.mxu0 0.0
    %641 = vmatprep.subr.mxu0 0.0
    %642 = vmatpush2.msra.mxu0 0.0
    %643 = vmatprep.subr.mxu0 0.0
    %644 = vmatpush2.msra.mxu0 0.0
    %645 = vmatprep.subr.mxu0 0.0
    %646 = vmatpush2.msra.mxu0 0.0
    %647 = vmatprep.subr.mxu0 0.0
    %648 = vmatpush2.msra.mxu0 0.0
    %649 = vmatprep.subr.mxu0 0.0
    %650 = vmatpush2.msra.mxu0 0.0
    %651 = vmatprep.mubr.f32.mxu0 0.0
    %652 = vmatmul.mubr.f32.gmra.mxu0 %v581
    %v653 = vpop.f32.mrf.mxu0
    %v654 = vadd.f32 0.0, %v653
    %v655 = vpop.f32.mrf.mxu0
    %656 = vdwg.mxu0
    %v657 = vlaneseq
    %v658 = vshrl.u32 %v657, 7
    %v659 = vsub.s32 0, %v658
    %v660 = vrot.slane %v654, %v659
    %v661 = vmul.f32 %v421, %v660
    %v662 = vmul.f32 %v422, %v660
    %v663 = vmul.f32 %v423, %v660
    %v664 = vmul.f32 %v424, %v660
    %v665 = vlaneseq
    %v666 = vshrl.u32 %v665, 7
    %v667 = vsub.s32 1, %v666
    %v668 = vrot.slane %v654, %v667
    %v669 = vadd.f32 %v661, %v668
    %v670 = vadd.f32 %v662, %v668
    %v671 = vadd.f32 %v663, %v668
    %v672 = vadd.f32 %v664, %v668
    %v673 = vmul.f32 %v669, 0.01
    %v674 = vmul.f32 %v670, 0.01
    %v675 = vmul.f32 %v671, 0.01
    %v676 = vmul.f32 %v672, 0.01
    %v677 = vmax.f32 %v669, %v673
    %v678 = vmax.f32 %v670, %v674
    %v679 = vmax.f32 %v671, %v675
    %v680 = vmax.f32 %v672, %v676
    %v681 = vpack.c.bf16 %v678, %v677
    %v682 = vpack.c.bf16 %v680, %v679
    %v683 = vld [vmem:[#allocation5] sm:$0xff]
    %v684 = vld [vmem:[#allocation5 + $0x8] sm:$0xf]
    %v685 = vld [vmem:[#allocation5 + $0xc] sm:$0xff]
    %v686 = vld [vmem:[#allocation5 + $0x14] sm:$0xf]
    %v687 = vld [vmem:[#allocation5 + $0x18] sm:$0xff]
    %v688 = vld [vmem:[#allocation5 + $0x20] sm:$0xf]
    %v689 = vld [vmem:[#allocation5 + $0x24] sm:$0xff]
    %v690 = vld [vmem:[#allocation5 + $0x2c] sm:$0xf]
    %v691 = vld [vmem:[#allocation5 + $0x30] sm:$0xff]
    %v692 = vld [vmem:[#allocation5 + $0x38] sm:$0xf]
    %v693 = vld [vmem:[#allocation5 + $0x3c] sm:$0xff]
    %v694 = vld [vmem:[#allocation5 + $0x44] sm:$0xf]
    %v695 = vld [vmem:[#allocation5 + $0x48] sm:$0xff]
    %v696 = vld [vmem:[#allocation5 + $0x50] sm:$0xf]
    %v697 = vld [vmem:[#allocation5 + $0x54] sm:$0xff]
    %v698 = vld [vmem:[#allocation5 + $0x5c] sm:$0xf]
    %v699 = vld [vmem:[#allocation5 + $0x60] sm:$0xff]
    %v700 = vld [vmem:[#allocation5 + $0x68] sm:$0xf]
    %v701 = vld [vmem:[#allocation5 + $0x6c] sm:$0xff]
    %v702 = vld [vmem:[#allocation5 + $0x74] sm:$0xf]
    %v703 = vld [vmem:[#allocation5 + $0x78] sm:$0xff]
    %v704 = vld [vmem:[#allocation5 + $0x80] sm:$0xf]
    %v705 = vld [vmem:[#allocation5 + $0x84] sm:$0xff]
    %v706 = vld [vmem:[#allocation5 + $0x8c] sm:$0xf]
    %v707 = vld [vmem:[#allocation5 + $0x90] sm:$0xff]
    %v708 = vld [vmem:[#allocation5 + $0x98] sm:$0xf]
    %v709 = vld [vmem:[#allocation5 + $0x9c] sm:$0xff]
    %v710 = vld [vmem:[#allocation5 + $0xa4] sm:$0xf]
    %v711 = vld [vmem:[#allocation5 + $0xa8] sm:$0xff]
    %v712 = vld [vmem:[#allocation5 + $0xb0] sm:$0xf]
    %v713 = vld [vmem:[#allocation5 + $0xb4] sm:$0xff]
    %v714 = vld [vmem:[#allocation5 + $0xbc] sm:$0xf]
    %v747 = vunpack.c.l.b16 %v683
    %v748 = vunpack.c.h.b16 %v683
    %v749 = vunpack.c.l.b16 %v684
    %v750 = vunpack.c.l.b16 %v685
    %v751 = vunpack.c.h.b16 %v685
    %v752 = vunpack.c.l.b16 %v686
    %v753 = vunpack.c.l.b16 %v687
    %v754 = vunpack.c.h.b16 %v687
    %v755 = vunpack.c.l.b16 %v688
    %v756 = vunpack.c.l.b16 %v689
    %v757 = vunpack.c.h.b16 %v689
    %v758 = vunpack.c.l.b16 %v690
    %v759 = vunpack.c.l.b16 %v691
    %v760 = vunpack.c.h.b16 %v691
    %v761 = vunpack.c.l.b16 %v692
    %v762 = vunpack.c.l.b16 %v693
    %v763 = vunpack.c.h.b16 %v693
    %v764 = vunpack.c.l.b16 %v694
    %v765 = vunpack.c.l.b16 %v695
    %v766 = vunpack.c.h.b16 %v695
    %v767 = vunpack.c.l.b16 %v696
    %v768 = vunpack.c.l.b16 %v697
    %v769 = vunpack.c.h.b16 %v697
    %v770 = vunpack.c.l.b16 %v698
    %v771 = vunpack.c.l.b16 %v699
    %v772 = vunpack.c.h.b16 %v699
    %v773 = vunpack.c.l.b16 %v700
    %v774 = vunpack.c.l.b16 %v701
    %v775 = vunpack.c.h.b16 %v701
    %v776 = vunpack.c.l.b16 %v702
    %v777 = vunpack.c.l.b16 %v703
    %v778 = vunpack.c.h.b16 %v703
    %v779 = vunpack.c.l.b16 %v704
    %v780 = vunpack.c.l.b16 %v705
    %v781 = vunpack.c.h.b16 %v705
    %v782 = vunpack.c.l.b16 %v706
    %v783 = vunpack.c.l.b16 %v707
    %v784 = vunpack.c.h.b16 %v707
    %v785 = vunpack.c.l.b16 %v708
    %v786 = vunpack.c.l.b16 %v709
    %v787 = vunpack.c.h.b16 %v709
    %v788 = vunpack.c.l.b16 %v710
    %v789 = vunpack.c.l.b16 %v711
    %v790 = vunpack.c.h.b16 %v711
    %v791 = vunpack.c.l.b16 %v712
    %v792 = vunpack.c.l.b16 %v713
    %v793 = vunpack.c.h.b16 %v713
    %v794 = vunpack.c.l.b16 %v714
    %v795 = vpack.c.b16 %v750, %v747
    %v796 = vpack.c.b16 %v751, %v748
    %v797 = vpack.c.b16 %v752, %v749
    %v798 = vpack.c.b16 %v756, %v753
    %v799 = vpack.c.b16 %v757, %v754
    %v800 = vpack.c.b16 %v758, %v755
    %v801 = vpack.c.b16 %v762, %v759
    %v802 = vpack.c.b16 %v763, %v760
    %v803 = vpack.c.b16 %v764, %v761
    %v804 = vpack.c.b16 %v768, %v765
    %v805 = vpack.c.b16 %v769, %v766
    %v806 = vpack.c.b16 %v770, %v767
    %v807 = vpack.c.b16 %v774, %v771
    %v808 = vpack.c.b16 %v775, %v772
    %v809 = vpack.c.b16 %v776, %v773
    %v810 = vpack.c.b16 %v780, %v777
    %v811 = vpack.c.b16 %v781, %v778
    %v812 = vpack.c.b16 %v782, %v779
    %v813 = vpack.c.b16 %v786, %v783
    %v814 = vpack.c.b16 %v787, %v784
    %v815 = vpack.c.b16 %v788, %v785
    %v816 = vpack.c.b16 %v792, %v789
    %v817 = vpack.c.b16 %v793, %v790
    %v818 = vpack.c.b16 %v794, %v791
    %843 = vmatprep.subr.bf16.mxu0 %v817
    %844 = vmatpush1.bf16.msra.mxu0 %v816
    %845 = vmatprep.subr.bf16.mxu0 %v814
    %846 = vmatpush1.bf16.msra.mxu0 %v813
    %847 = vmatprep.subr.bf16.mxu0 %v811
    %848 = vmatpush1.bf16.msra.mxu0 %v810
    %849 = vmatprep.subr.bf16.mxu0 %v808
    %850 = vmatpush1.bf16.msra.mxu0 %v807
    %851 = vmatprep.subr.bf16.mxu0 %v805
    %852 = vmatpush1.bf16.msra.mxu0 %v804
    %853 = vmatprep.subr.bf16.mxu0 %v802
    %854 = vmatpush1.bf16.msra.mxu0 %v801
    %855 = vmatprep.subr.bf16.mxu0 %v799
    %856 = vmatpush1.bf16.msra.mxu0 %v798
    %857 = vmatprep.subr.bf16.mxu0 %v796
    %858 = vmatpush1.bf16.msra.mxu0 %v795
    %859 = vmatprep.subr.bf16.mxu0 0
    %860 = vmatpush2.bf16.msra.mxu0 0
    %861 = vmatprep.subr.bf16.mxu0 0
    %862 = vmatpush2.bf16.msra.mxu0 0
    %863 = vmatprep.subr.bf16.mxu0 0
    %864 = vmatpush2.bf16.msra.mxu0 0
    %865 = vmatprep.subr.bf16.mxu0 0
    %866 = vmatpush2.bf16.msra.mxu0 0
    %867 = vmatprep.subr.bf16.mxu0 0
    %868 = vmatpush2.bf16.msra.mxu0 0
    %869 = vmatprep.subr.bf16.mxu0 0
    %870 = vmatpush2.bf16.msra.mxu0 0
    %871 = vmatprep.subr.bf16.mxu0 0
    %872 = vmatpush2.bf16.msra.mxu0 0
    %873 = vmatprep.subr.bf16.mxu0 0
    %874 = vmatpush2.bf16.msra.mxu0 0
    %875 = vmatprep.mubr.bf16.mxu0 0
    %876 = vmatmul.mubr.bf16.gmra.mxu0 %v681
    %v877 = vpop.f32.mrf.mxu0
    %v878 = vadd.f32 0.0, %v877
    %v879 = vpop.f32.mrf.mxu0
    %v880 = vadd.f32 0.0, %v879
    %v881 = vpop.f32.mrf.mxu0
    %v882 = vadd.f32 0.0, %v881
    %v883 = vpop.f32.mrf.mxu0
    %v884 = vadd.f32 0.0, %v883
    %885 = vmatprep.mubr.bf16.mxu0 0
    %886 = vmatmul.mubr.bf16.gmra.mxu0 %v682
    %v887 = vpop.f32.mrf.mxu0
    %v888 = vadd.f32 0.0, %v887
    %v889 = vpop.f32.mrf.mxu0
    %v890 = vadd.f32 0.0, %v889
    %v891 = vpop.f32.mrf.mxu0
    %v892 = vadd.f32 0.0, %v891
    %v893 = vpop.f32.mrf.mxu0
    %v894 = vadd.f32 0.0, %v893
    %895 = vdwg.mxu0
    %896 = vmatprep.subr.bf16.mxu0 0
    %897 = vmatpush1.bf16.msra.mxu0 %v818
    %898 = vmatprep.subr.bf16.mxu0 0
    %899 = vmatpush1.bf16.msra.mxu0 %v815
    %900 = vmatprep.subr.bf16.mxu0 0
    %901 = vmatpush1.bf16.msra.mxu0 %v812
    %902 = vmatprep.subr.bf16.mxu0 0
    %903 = vmatpush1.bf16.msra.mxu0 %v809
    %904 = vmatprep.subr.bf16.mxu0 0
    %905 = vmatpush1.bf16.msra.mxu0 %v806
    %906 = vmatprep.subr.bf16.mxu0 0
    %907 = vmatpush1.bf16.msra.mxu0 %v803
    %908 = vmatprep.subr.bf16.mxu0 0
    %909 = vmatpush1.bf16.msra.mxu0 %v800
    %910 = vmatprep.subr.bf16.mxu0 0
    %911 = vmatpush1.bf16.msra.mxu0 %v797
    %912 = vmatprep.subr.bf16.mxu0 0
    %913 = vmatpush2.bf16.msra.mxu0 0
    %914 = vmatprep.subr.bf16.mxu0 0
    %915 = vmatpush2.bf16.msra.mxu0 0
    %916 = vmatprep.subr.bf16.mxu0 0
    %917 = vmatpush2.bf16.msra.mxu0 0
    %918 = vmatprep.subr.bf16.mxu0 0
    %919 = vmatpush2.bf16.msra.mxu0 0
    %920 = vmatprep.subr.bf16.mxu0 0
    %921 = vmatpush2.bf16.msra.mxu0 0
    %922 = vmatprep.subr.bf16.mxu0 0
    %923 = vmatpush2.bf16.msra.mxu0 0
    %924 = vmatprep.subr.bf16.mxu0 0
    %925 = vmatpush2.bf16.msra.mxu0 0
    %926 = vmatprep.subr.bf16.mxu0 0
    %927 = vmatpush2.bf16.msra.mxu0 0
    %928 = vmatprep.mubr.bf16.mxu0 0
    %929 = vmatmul.mubr.bf16.gmra.mxu0 %v681
    %v930 = vpop.f32.mrf.mxu0
    %v931 = vadd.f32 0.0, %v930
    %v932 = vpop.f32.mrf.mxu0
    %v933 = vpop.f32.mrf.mxu0
    %v934 = vadd.f32 0.0, %v933
    %v935 = vpop.f32.mrf.mxu0
    %936 = vmatprep.mubr.bf16.mxu0 0
    %937 = vmatmul.mubr.bf16.gmra.mxu0 %v682
    %v938 = vpop.f32.mrf.mxu0
    %v939 = vadd.f32 0.0, %v938
    %v940 = vpop.f32.mrf.mxu0
    %v941 = vpop.f32.mrf.mxu0
    %v942 = vadd.f32 0.0, %v941
    %v943 = vpop.f32.mrf.mxu0
    %944 = vdwg.mxu0
    %v945 = vrot.slane %v878, 7
    %v946 = vrot.slane %v882, 7
    %v947 = vrot.slane %v888, 7
    %v948 = vrot.slane %v892, 7
    %v949 = vsel %vm395, %v947, %v948
    %v950 = vsel %vm395, %v946, %v947
    %v951 = vsel %vm395, %v945, %v946
    %v952 = vsel %vm395, %v948, %v945
    %v953 = vsel %vm115, %v952, 0.0
    %v954 = vsel %vm116, %v951, 0.0
    %v955 = vsel %vm117, %v950, 0.0
    %v956 = vsel %vm118, %v949, 0.0
    %v957 = vrot.slane %v931, 1
    %v958 = vrot.slane %v934, 1
    %v959 = vrot.slane %v939, 1
    %v960 = vrot.slane %v942, 1
    %v961 = vsel %vm408, %v959, %v960
    %v962 = vsel %vm408, %v958, %v959
    %v963 = vsel %vm408, %v957, %v958
    %v964 = vsel %vm408, %v960, %v957
    %v965 = vsel %vm119, %v963, 0.0
    %v966 = vsel %vm120, %v962, 0.0
    %v967 = vsel %vm121, %v961, 0.0
    %v968 = vsel %vm122, %v964, 0.0
    %v969 = vadd.f32 %v880, %v953
    %v970 = vadd.f32 %v884, %v954
    %v971 = vadd.f32 %v890, %v955
    %v972 = vadd.f32 %v894, %v956
    %v973 = vadd.f32 %v969, %v965
    %v974 = vadd.f32 %v970, %v966
    %v975 = vadd.f32 %v971, %v967
    %v976 = vadd.f32 %v972, %v968
    %v977 = vadd.f32 %v973, %v974
    %v978 = vadd.f32 %v977, %v975
    %v979 = vadd.f32 %v978, %v976
    %v980 = vrot.slane %v979, 4
    %v981 = vadd.f32 %v979, %v980
    %v982 = vrot.slane %v981, 2
    %v983 = vadd.f32 %v981, %v982
    %v984 = vrot.slane %v983, 1
    %v985 = vadd.f32 %v983, %v984
    %v986 = vmul.f32 %v973, %v973
    %v987 = vmul.f32 %v974, %v974
    %v988 = vmul.f32 %v975, %v975
    %v989 = vmul.f32 %v976, %v976
    %v990 = vadd.f32 %v986, %v987
    %v991 = vadd.f32 %v990, %v988
    %v992 = vadd.f32 %v991, %v989
    %v993 = vrot.slane %v992, 4
    %v994 = vadd.f32 %v992, %v993
    %v995 = vrot.slane %v994, 2
    %v996 = vadd.f32 %v994, %v995
    %v997 = vrot.slane %v996, 1
    %v998 = vadd.f32 %v996, %v997
    %v999 = vsel %vm447, %v985, %v998
    %1000 = vmatprep.subr.mxu0 0.0
    %1001 = vmatpush1.msra.mxu0 %v464
    %1002 = vmatprep.subr.mxu0 0.0
    %1003 = vmatpush1.msra.mxu0 %v463
    %1004 = vmatprep.subr.mxu0 0.0
    %1005 = vmatpush1.msra.mxu0 %v462
    %1006 = vmatprep.subr.mxu0 0.0
    %1007 = vmatpush1.msra.mxu0 %v461
    %1008 = vmatprep.subr.mxu0 0.0
    %1009 = vmatpush1.msra.mxu0 %v460
    %1010 = vmatprep.subr.mxu0 0.0
    %1011 = vmatpush1.msra.mxu0 %v459
    %1012 = vmatprep.subr.mxu0 0.0
    %1013 = vmatpush1.msra.mxu0 %v458
    %1014 = vmatprep.subr.mxu0 0.0
    %1015 = vmatpush1.msra.mxu0 %v457
    %1016 = vmatprep.subr.mxu0 0.0
    %1017 = vmatpush1.msra.mxu0 %v456
    %1018 = vmatprep.subr.mxu0 0.0
    %1019 = vmatpush1.msra.mxu0 %v455
    %1020 = vmatprep.subr.mxu0 0.0
    %1021 = vmatpush1.msra.mxu0 %v454
    %1022 = vmatprep.subr.mxu0 0.0
    %1023 = vmatpush1.msra.mxu0 %v453
    %1024 = vmatprep.subr.mxu0 0.0
    %1025 = vmatpush1.msra.mxu0 %v452
    %1026 = vmatprep.subr.mxu0 0.0
    %1027 = vmatpush1.msra.mxu0 %v451
    %1028 = vmatprep.subr.mxu0 0.0
    %1029 = vmatpush1.msra.mxu0 %v450
    %1030 = vmatprep.subr.mxu0 0.0
    %1031 = vmatpush1.msra.mxu0 %v449
    %1032 = vmatprep.subr.mxu0 0.0
    %1033 = vmatpush2.msra.mxu0 0.0
    %1034 = vmatprep.subr.mxu0 0.0
    %1035 = vmatpush2.msra.mxu0 0.0
    %1036 = vmatprep.subr.mxu0 0.0
    %1037 = vmatpush2.msra.mxu0 0.0
    %1038 = vmatprep.subr.mxu0 0.0
    %1039 = vmatpush2.msra.mxu0 0.0
    %1040 = vmatprep.subr.mxu0 0.0
    %1041 = vmatpush2.msra.mxu0 0.0
    %1042 = vmatprep.subr.mxu0 0.0
    %1043 = vmatpush2.msra.mxu0 0.0
    %1044 = vmatprep.subr.mxu0 0.0
    %1045 = vmatpush2.msra.mxu0 0.0
    %1046 = vmatprep.subr.mxu0 0.0
    %1047 = vmatpush2.msra.mxu0 0.0
    %1048 = vmatprep.subr.mxu0 0.0
    %1049 = vmatpush2.msra.mxu0 0.0
    %1050 = vmatprep.subr.mxu0 0.0
    %1051 = vmatpush2.msra.mxu0 0.0
    %1052 = vmatprep.subr.mxu0 0.0
    %1053 = vmatpush2.msra.mxu0 0.0
    %1054 = vmatprep.subr.mxu0 0.0
    %1055 = vmatpush2.msra.mxu0 0.0
    %1056 = vmatprep.subr.mxu0 0.0
    %1057 = vmatpush2.msra.mxu0 0.0
    %1058 = vmatprep.subr.mxu0 0.0
    %1059 = vmatpush2.msra.mxu0 0.0
    %1060 = vmatprep.subr.mxu0 0.0
    %1061 = vmatpush2.msra.mxu0 0.0
    %1062 = vmatprep.subr.mxu0 0.0
    %1063 = vmatpush2.msra.mxu0 0.0
    %1064 = vmatprep.mubr.f32.mxu0 0.0
    %1065 = vmatmul.mubr.f32.gmra.mxu0 %v999
    %v1066 = vpop.f32.mrf.mxu0
    %v1067 = vadd.f32 0.0, %v1066
    %v1068 = vpop.f32.mrf.mxu0
    %1069 = vdwg.mxu0
    %v1070 = vmul.f32 %v1067, 0.001953125
    %v1071 = vmul.f32 %v1070, %v1070
    %v1073 = vrot.slane %v1071, 7
    %v1075 = vsub.f32 %v1070, %v1073
    %v1076 = vld [vmem:[%s7] sm:$0x1]
    %v1077 = vadd.f32 %v1075, 1e-05
    %v1078 = vrsqrt.pop %v1077
    %v1081 = vunpack.c.l.s4 1966171168
    %v1082 = vunpack.c.0.s8 %v1081
    %v1083 = vlaneseq
    %v1084 = vshrl.u32 %v1083, 7
    %v1085 = vsub.s32 %v1082, %v1084
    %v1086 = vrot.slane %v1078, %v1085
    %v1087 = vcombine.high %v1086, %v1086
    %v1089 = vunpack.c.l.s4 1966171168
    %v1090 = vunpack.c.0.s8 %v1089
    %v1091 = vlaneseq
    %v1092 = vshrl.u32 %v1091, 7
    %v1093 = vsub.s32 %v1090, %v1092
    %v1094 = vrot.slane %v1087, %v1093
    %v1096 = vmul.f32 %v1076, %v1094
    %v1097 = vld [vmem:[%s8] sm:$0x1]
    %v1098 = vmul.f32 %v1070, %v1096
    %v1099 = vsub.f32 %v1097, %v1098
    %v1101 = vlaneseq
    %v1102 = vshrl.u32 %v1101, 7
    %v1103 = vsub.s32 0, %v1102
    %v1104 = vrot.slane %v1096, %v1103
    %v1107 = vlaneseq
    %v1108 = vshrl.u32 %v1107, 7
    %v1109 = vsub.s32 0, %v1108
    %v1110 = vrot.slane %v1099, %v1109
    %v1112 = vsel %vm447, %v1104, %v1110
    %v1114 = vsel %vm579, %v1112, 0
    %1116 = vmatprep.subr.mxu0 0.0
    %1117 = vmatpush1.msra.mxu0 0.0
    %1118 = vmatprep.subr.mxu0 0.0
    %1119 = vmatpush1.msra.mxu0 0.0
    %1120 = vmatprep.subr.mxu0 0.0
    %1121 = vmatpush1.msra.mxu0 0.0
    %1122 = vmatprep.subr.mxu0 0.0
    %1123 = vmatpush1.msra.mxu0 0.0
    %1124 = vmatprep.subr.mxu0 0.0
    %1125 = vmatpush1.msra.mxu0 0.0
    %1126 = vmatprep.subr.mxu0 0.0
    %1127 = vmatpush1.msra.mxu0 0.0
    %1128 = vmatprep.subr.mxu0 0.0
    %1129 = vmatpush1.msra.mxu0 0.0
    %1130 = vmatprep.subr.mxu0 0.0
    %1131 = vmatpush1.msra.mxu0 0.0
    %1132 = vmatprep.subr.mxu0 0.0
    %1133 = vmatpush1.msra.mxu0 0.0
    %1134 = vmatprep.subr.mxu0 0.0
    %1135 = vmatpush1.msra.mxu0 0.0
    %1136 = vmatprep.subr.mxu0 0.0
    %1137 = vmatpush1.msra.mxu0 0.0
    %1138 = vmatprep.subr.mxu0 0.0
    %1139 = vmatpush1.msra.mxu0 0.0
    %1140 = vmatprep.subr.mxu0 0.0
    %1141 = vmatpush1.msra.mxu0 0.0
    %1142 = vmatprep.subr.mxu0 0.0
    %1143 = vmatpush1.msra.mxu0 0.0
    %1144 = vmatprep.subr.mxu0 0.0
    %1145 = vmatpush1.msra.mxu0 0.0
    %1146 = vmatprep.subr.mxu0 0.0
    %1147 = vmatpush1.msra.mxu0 %v585
    %1148 = vmatprep.subr.mxu0 0.0
    %1149 = vmatpush2.msra.mxu0 0.0
    %1150 = vmatprep.subr.mxu0 0.0
    %1151 = vmatpush2.msra.mxu0 0.0
    %1152 = vmatprep.subr.mxu0 0.0
    %1153 = vmatpush2.msra.mxu0 0.0
    %1154 = vmatprep.subr.mxu0 0.0
    %1155 = vmatpush2.msra.mxu0 0.0
    %1156 = vmatprep.subr.mxu0 0.0
    %1157 = vmatpush2.msra.mxu0 0.0
    %1158 = vmatprep.subr.mxu0 0.0
    %1159 = vmatpush2.msra.mxu0 0.0
    %1160 = vmatprep.subr.mxu0 0.0
    %1161 = vmatpush2.msra.mxu0 0.0
    %1162 = vmatprep.subr.mxu0 0.0
    %1163 = vmatpush2.msra.mxu0 0.0
    %1164 = vmatprep.subr.mxu0 0.0
    %1165 = vmatpush2.msra.mxu0 0.0
    %1166 = vmatprep.subr.mxu0 0.0
    %1167 = vmatpush2.msra.mxu0 0.0
    %1168 = vmatprep.subr.mxu0 0.0
    %1169 = vmatpush2.msra.mxu0 0.0
    %1170 = vmatprep.subr.mxu0 0.0
    %1171 = vmatpush2.msra.mxu0 0.0
    %1172 = vmatprep.subr.mxu0 0.0
    %1173 = vmatpush2.msra.mxu0 0.0
    %1174 = vmatprep.subr.mxu0 0.0
    %1175 = vmatpush2.msra.mxu0 0.0
    %1176 = vmatprep.subr.mxu0 0.0
    %1177 = vmatpush2.msra.mxu0 0.0
    %1178 = vmatprep.subr.mxu0 0.0
    %1179 = vmatpush2.msra.mxu0 0.0
    %1180 = vmatprep.mubr.f32.mxu0 0.0
    %1181 = vmatmul.mubr.f32.gmra.mxu0 %v1114
    %v1182 = vpop.f32.mrf.mxu0
    %v1183 = vadd.f32 0.0, %v1182
    %v1184 = vpop.f32.mrf.mxu0
    %1185 = vdwg.mxu0
    %v1186 = vlaneseq
    %v1187 = vshrl.u32 %v1186, 7
    %v1188 = vsub.s32 0, %v1187
    %v1189 = vrot.slane %v1183, %v1188
    %v1190 = vmul.f32 %v973, %v1189
    %v1191 = vmul.f32 %v974, %v1189
    %v1192 = vmul.f32 %v975, %v1189
    %v1193 = vmul.f32 %v976, %v1189
    %v1194 = vlaneseq
    %v1195 = vshrl.u32 %v1194, 7
    %v1196 = vsub.s32 1, %v1195
    %v1197 = vrot.slane %v1183, %v1196
    %v1198 = vadd.f32 %v1190, %v1197
    %v1199 = vadd.f32 %v1191, %v1197
    %v1200 = vadd.f32 %v1192, %v1197
    %v1201 = vadd.f32 %v1193, %v1197
    %v1202 = vadd.f32 %v1198, %v123
    %v1203 = vadd.f32 %v1199, %v124
    %v1204 = vadd.f32 %v1200, %v125
    %v1205 = vadd.f32 %v1201, %v126
    %v1206 = vmul.f32 %v1202, 0.01
    %v1207 = vmul.f32 %v1203, 0.01
    %v1208 = vmul.f32 %v1204, 0.01
    %v1209 = vmul.f32 %v1205, 0.01
    %v1210 = vmax.f32 %v1202, %v1206
    %v1211 = vmax.f32 %v1203, %v1207
    %v1212 = vmax.f32 %v1204, %v1208
    %v1213 = vmax.f32 %v1205, %v1209
    %1214 = vst [vmem:[#allocation7] sm:$0xff] %v1210
    %1215 = vst [vmem:[#allocation7 + $0x8] sm:$0xff] %v1211
    %1216 = vst [vmem:[#allocation7 + $0x10] sm:$0xff] %v1212
    %1217 = vst [vmem:[#allocation7 + $0x18] sm:$0xff] %v1213
    // Predicated region
    $region46: #{tpu_custom_call.1} parent=1 // pred_check
      _
    $region47: #{tpu_custom_call.1} parent=1 // pred_check_branch
      %1219 = sbr.rel (0) target = $region49
    $region48: #{tpu_custom_call.1} parent=1 // pred_region
      %s1221 = ssub.s32 512, 512
      %1222 = vsyncadd [#allocation4], %s1221
      %s1223 = sshll.u32 [#allocation7], 4
      %s1224 = int_to_ptr.vmem [resolvable:$true] %s1223
      %1229 = dma.vmem_to_hbm [thread:$0]  %s1224, 512, %s9, [#allocation4], 128, 128, 8
    $region49: #{tpu_custom_call.1} parent=1 // pred_fallthru
      _
    // Predicated region
    $region50: #{tpu_custom_call.1} parent=1 // pred_check
      _
    $region51: #{tpu_custom_call.1} parent=1 // pred_check_branch
      %1231 = sbr.rel (0) target = $region53
    $region52: #{tpu_custom_call.1} parent=1 // pred_region
      %1232 = dma.done [#allocation4], 512
    $region53: #{tpu_custom_call.1} parent=1 // pred_fallthru
      _
    %1233 = vsyncpa [#allocation3], 1
    %1234 = vsyncpa [#allocation6], 1
    %1235 = vsyncpa [#allocation4], 1

</llo_original>
